<compile_context>
chip_gen: v7x
topology: tpu7x:2x2x1
jax: 0.10.0
libtpu: 0.0.40
codegen_flags: <defaults>
</compile_context>

<pallas_src>
import functools

import jax
import jax.numpy as jnp
import numpy as np
from jax.experimental import pallas as pl
from jax.experimental.pallas import tpu as pltpu


def force_pair(v):
    """Convert v to a pair of ints, if it isn't already."""
    if isinstance(v, tuple):
        if len(v) != 2:
            raise ValueError(v)
        return (int(v[0]), int(v[1]))
    if isinstance(v, (int, np.integer)):
        return (int(v), int(v))
    raise ValueError(v)


def _maxpool2d_kernel(x_ref, o_ref, *scratch, KH, KW, SH, SW, PH, PW, OH, OW):
    """Pools a (TC, H, W) block of channel planes into (TC, OH, OW)."""
    TC, H, W = x_ref.shape
    dtype = x_ref.dtype
    # Finite "-inf": safe because every window contains >= 1 real element
    # (enforced by PH < KH and PW < KW in the wrapper).
    neg = float(jnp.finfo(dtype).min)

    # ---------------- height (sublane) direction ----------------
    si = 0
    if PH > 0:
        # Rows-only padded copy (lane-aligned stores); W padding is never
        # materialized for the full plane.
        hpad = scratch[si]
        si += 1                                            # (TC, H + 2*PH, W)
        HP = H + 2 * PH
        row_fill = jnp.full((TC, PH, W), neg, dtype)
        hpad[:, 0:PH, :] = row_fill
        hpad[:, PH + H:HP, :] = row_fill
        hpad[:, PH:PH + H, :] = x_ref[...]
        src = hpad
    else:
        src = x_ref                                        # no scratch, no copy

    # Pool over KH rows and stride-compact to the OH output rows in one step:
    # output row oh reads (padded) input rows SH*oh + kh via sublane-strided
    # loads, so no row-selection matmul and no all-window-starts intermediate.
    def row_take(kh):
        if SH == 1:
            return src[:, pl.ds(kh, OH), :]
        return src[:, pl.ds(kh, OH, stride=SH), :]

    hm = row_take(0)
    for kh in range(1, KH):
        hm = jnp.maximum(hm, row_take(kh))                 # (TC, OH, W)

    # ---------------- width (lane) direction ----------------
    MW = SW * (OW - 1) + 1            # window-start columns actually needed
    if PW > 0:
        wpad = scratch[si]
        si += 1                                            # (TC, OH, W + 2*PW)
        WP = W + 2 * PW
        col_fill = jnp.full((TC, OH, PW), neg, dtype)
        wpad[:, :, 0:PW] = col_fill
        wpad[:, :, PW + W:WP] = col_fill
        wpad[:, :, PW:PW + W] = hm

        def col_take(kw):
            return wpad[:, :, kw:kw + MW]
    else:

        def col_take(kw):
            return hm[:, :, kw:kw + MW]

    wm = col_take(0)
    for kw in range(1, KW):
        wm = jnp.maximum(wm, col_take(kw))                 # (TC, OH, MW)

    # Compact every SW-th window-start column (lane axis).
    if SW == 1:
        out = wm                                           # MW == OW: identity
    else:
        # Single lane-direction compaction: one batched MXU matmul against a
        # one-hot 0/1 selector.  bf16: 1-pass default precision is exact.
        # f32: HIGHEST keeps the selected values intact (bf16 chunks x exact 1).
        m = jax.lax.broadcasted_iota(jnp.int32, (MW, OW), 0)
        q = jax.lax.broadcasted_iota(jnp.int32, (MW, OW), 1)
        sel = (m == SW * q).astype(dtype)                  # (MW, OW)
        sel_b = jnp.broadcast_to(sel, (TC, MW, OW))
        prec = (jax.lax.Precision.HIGHEST if dtype == jnp.float32
                else jax.lax.Precision.DEFAULT)
        out = jnp.einsum("bom,bmq->boq", wm, sel_b,
                         preferred_element_type=jnp.float32,
                         precision=prec)                    # (TC, OH, OW) f32

    o_ref[...] = out.astype(o_ref.dtype)


def maxpool2d_pallas(x, kernel_size, stride=None, padding=0):
    """Functional maxpool2d, same semantics as the reference PyTorch maxpool2d."""
    KH, KW = force_pair(kernel_size)
    SH, SW = force_pair(stride if stride is not None else kernel_size)
    PH, PW = force_pair(padding)
    assert KH > 0 and KW > 0 and SH > 0 and SW > 0 and PH >= 0 and PW >= 0
    # Every pooling window must contain at least one real input element, which
    # makes the finite-min padding value exactly equivalent to -inf padding.
    assert PH < KH and PW < KW, "padding must be smaller than kernel_size"
    assert jnp.issubdtype(x.dtype, jnp.floating), "floating-point inputs only"

    B, C, H, W = x.shape
    OH = (H + 2 * PH - KH) // SH + 1
    OW = (W + 2 * PW - KW) // SW + 1
    assert OH > 0 and OW > 0

    # Fuse (B, C) -> N and block `tc` whole channel planes per grid step.
    N = B * C
    x2 = x.reshape(N, H, W)
    plane_bytes = H * W * x.dtype.itemsize

    # Per-generation VMEM budget (v7x: 64 MiB, v5e/v6e: 128 MiB physical).
    try:
        vmem_cap = int(pltpu.get_tpu_info().vmem_capacity_bytes)
    except Exception:
        vmem_cap = 64 * 1024 * 1024                       # conservative (v7x)
    vmem_limit = int(min(vmem_cap * 3 // 4, 100 * 1024 * 1024))
    # ~1/8 of the limit per input block leaves room for the double-buffered
    # input + output, the optional padded-row scratch, and the row-compacted
    # f32 intermediates / selector of the lane compaction.
    target_block = max(plane_bytes, vmem_limit // 8)
    # TODO(synk): for planes larger than the VMEM budget, tile H on a second
    # grid axis with a (KH-1)-row halo instead of whole-plane blocks.

    tc = max(1, min(N, target_block // plane_bytes))
    nsteps = pl.cdiv(N, tc)
    if nsteps == 1 and N >= 2:
        nsteps = 2                   # give both v7x TensorCores work
    elif nsteps > 1 and nsteps % 2 == 1:
        nsteps += 1                  # even step count -> balanced megacore split
    tc = pl.cdiv(N, nsteps)
    grid = (pl.cdiv(N, tc),)
    # NOTE: a ragged last block recomputes a few already-computed planes
    # (channels are independent) -- correct, slightly wasted work.

    scratch_shapes = []
    if PH > 0:
        scratch_shapes.append(pltpu.VMEM((tc, H + 2 * PH, W), x.dtype))
    if PW > 0:
        scratch_shapes.append(pltpu.VMEM((tc, OH, W + 2 * PW), x.dtype))

    kernel = functools.partial(
        _maxpool2d_kernel,
        KH=KH, KW=KW, SH=SH, SW=SW, PH=PH, PW=PW, OH=OH, OW=OW,
    )

    # TODO(synk): for tiny spatial dims a channel-last (H, W, tc) layout would
    # give lane-dense outputs (no masked vst); needs a wrapper-side transpose.
    out2 = pl.pallas_call(
        kernel,
        out_shape=jax.ShapeDtypeStruct((N, OH, OW), x.dtype),
        grid=grid,
        in_specs=[pl.BlockSpec((tc, H, W), lambda i: (i, 0, 0))],
        out_specs=pl.BlockSpec((tc, OH, OW), lambda i: (i, 0, 0)),
        scratch_shapes=scratch_shapes,
        compiler_params=pltpu.CompilerParams(
            dimension_semantics=("parallel",),
            vmem_limit_bytes=vmem_limit,
        ),
    )(x2)
    return out2.reshape(B, C, OH, OW)


class MaxPool2d:
    """Pallas-backed equivalent of the reference nn.Module MaxPool2d."""

    def __init__(self, kernel_size, stride=None, padding=1):
        self.kernel_size = force_pair(kernel_size)
        self.stride = force_pair(stride) if stride is not None else self.kernel_size
        self.padding = force_pair(padding)

    def __call__(self, x):
        return maxpool2d_pallas(x, self.kernel_size, self.stride, self.padding)

    def extra_repr(self) -> str:
        return (f"kernel_size={self.kernel_size}, stride={self.stride}, "
                f"padding={self.padding}")


def _reference_maxpool2d(x, kernel_size, stride, padding):
    """Pure-JAX reference (lax.reduce_window with -inf padding) for verification."""
    KH, KW = kernel_size
    SH, SW = stride
    PH, PW = padding
    return jax.lax.reduce_window(
        x,
        -jnp.inf,
        jax.lax.max,
        window_dimensions=(1, 1, KH, KW),
        window_strides=(1, 1, SH, SW),
        padding=((0, 0), (0, 0), (PH, PH), (PW, PW)),
    )


if __name__ == "__main__":
    key = jax.random.PRNGKey(0)
    configs = [
        # (dtype, kernel_size, stride, padding, tol)
        (jnp.float32, 2, None, 1, 1e-5),    # module default: k=2 -> stride 2, pad 1
        (jnp.float32, 2, None, 0, 1e-5),    # no padding: scratch-free fast path
        (jnp.bfloat16, 3, 2, 1, 1e-2),      # bf16 + 3x3 window (KH=3 running max)
    ]
    for i, (dtype, ks, st, pd, tol) in enumerate(configs):
        k = jax.random.fold_in(key, i)
        x = jax.random.normal(k, (2, 4, 16, 16), dtype=dtype)
        pool = MaxPool2d(kernel_size=ks, stride=st, padding=pd)

        out = jax.block_until_ready(pool(x))

        ref = _reference_maxpool2d(x, pool.kernel_size, pool.stride, pool.padding)
        assert out.shape == ref.shape, (out.shape, ref.shape)
        ok = bool(jnp.allclose(out.astype(jnp.float32), ref.astype(jnp.float32),
                               atol=tol, rtol=tol))
        if not ok:
            raise AssertionError(
                f"Pallas maxpool2d mismatch for config {i}: {pool.extra_repr()}")

    print("KERNEL_OK")
</pallas_src>

<mosaic_0001>
module attributes {stable_mosaic.version = 11 : i64} {
  func.func @_maxpool2d_kernel(%arg0: i32, %arg1: memref<4x16x16xf32, #tpu.memory_space<vmem>>, %arg2: memref<4x9x9xf32, #tpu.memory_space<vmem>>, %arg3: memref<4x18x16xf32, #tpu.memory_space<vmem>>, %arg4: memref<4x9x18xf32, #tpu.memory_space<vmem>>) attributes {dimension_semantics = [#tpu.dimension_semantics<parallel>], iteration_bounds = array<i64: 2>, scalar_prefetch = 0 : i64, scratch_operands = 2 : i64, tpu.core_type = #tpu.core_type<tc>, window_params = [{transform_indices = @transform_0, window_bounds = array<i64: 4, 16, 16>}, {transform_indices = @transform_1, window_bounds = array<i64: 4, 9, 9>}]} {
    %cst = arith.constant -3.40282347E+38 : f32
    %0 = vector.broadcast %cst : f32 to vector<4x1x16xf32>
    %c0 = arith.constant 0 : index
    %c0_0 = arith.constant 0 : index
    %c0_1 = arith.constant 0 : index
    %1 = vector.load %arg3[%c0, %c0_0, %c0_1] : memref<4x18x16xf32, #tpu.memory_space<vmem>>, vector<4x1x16xf32>
    tpu.vector_store %arg3[%c0, %c0_0, %c0_1], %0 {strides = array<i32>} : memref<4x18x16xf32, #tpu.memory_space<vmem>>, vector<4x1x16xf32>,
    %c0_2 = arith.constant 0 : index
    %c17 = arith.constant 17 : index
    %c0_3 = arith.constant 0 : index
    %2 = vector.load %arg3[%c0_2, %c17, %c0_3] : memref<4x18x16xf32, #tpu.memory_space<vmem>>, vector<4x1x16xf32>
    tpu.vector_store %arg3[%c0_2, %c17, %c0_3], %0 {strides = array<i32>} : memref<4x18x16xf32, #tpu.memory_space<vmem>>, vector<4x1x16xf32>,
    %c0_4 = arith.constant 0 : index
    %c0_5 = arith.constant 0 : index
    %c0_6 = arith.constant 0 : index
    %3 = vector.load %arg1[%c0_4, %c0_5, %c0_6] : memref<4x16x16xf32, #tpu.memory_space<vmem>>, vector<4x16x16xf32>
    %c0_7 = arith.constant 0 : index
    %c1 = arith.constant 1 : index
    %c0_8 = arith.constant 0 : index
    %4 = vector.load %arg3[%c0_7, %c1, %c0_8] : memref<4x18x16xf32, #tpu.memory_space<vmem>>, vector<4x16x16xf32>
    tpu.vector_store %arg3[%c0_7, %c1, %c0_8], %3 {strides = array<i32>} : memref<4x18x16xf32, #tpu.memory_space<vmem>>, vector<4x16x16xf32>,
    %c0_9 = arith.constant 0 : index
    %c0_10 = arith.constant 0 : index
    %c0_11 = arith.constant 0 : index
    %5 = tpu.strided_load %arg3[%c0_9, %c0_10, %c0_11] {strides = array<i32: 1, 2, 1>} : memref<4x18x16xf32, #tpu.memory_space<vmem>>, vector<4x9x16xf32>
    %c0_12 = arith.constant 0 : index
    %c1_13 = arith.constant 1 : index
    %c0_14 = arith.constant 0 : index
    %6 = tpu.strided_load %arg3[%c0_12, %c1_13, %c0_14] {strides = array<i32: 1, 2, 1>} : memref<4x18x16xf32, #tpu.memory_space<vmem>>, vector<4x9x16xf32>
    %7 = arith.maximumf %5, %6 : vector<4x9x16xf32>
    %cst_15 = arith.constant -3.40282347E+38 : f32
    %8 = vector.broadcast %cst_15 : f32 to vector<4x9x1xf32>
    %c0_16 = arith.constant 0 : index
    %c0_17 = arith.constant 0 : index
    %c0_18 = arith.constant 0 : index
    %9 = vector.load %arg4[%c0_16, %c0_17, %c0_18] : memref<4x9x18xf32, #tpu.memory_space<vmem>>, vector<4x9x1xf32>
    tpu.vector_store %arg4[%c0_16, %c0_17, %c0_18], %8 {strides = array<i32>} : memref<4x9x18xf32, #tpu.memory_space<vmem>>, vector<4x9x1xf32>,
    %c0_19 = arith.constant 0 : index
    %c0_20 = arith.constant 0 : index
    %c17_21 = arith.constant 17 : index
    %10 = vector.load %arg4[%c0_19, %c0_20, %c17_21] : memref<4x9x18xf32, #tpu.memory_space<vmem>>, vector<4x9x1xf32>
    tpu.vector_store %arg4[%c0_19, %c0_20, %c17_21], %8 {strides = array<i32>} : memref<4x9x18xf32, #tpu.memory_space<vmem>>, vector<4x9x1xf32>,
    %c0_22 = arith.constant 0 : index
    %c0_23 = arith.constant 0 : index
    %c1_24 = arith.constant 1 : index
    %11 = vector.load %arg4[%c0_22, %c0_23, %c1_24] : memref<4x9x18xf32, #tpu.memory_space<vmem>>, vector<4x9x16xf32>
    tpu.vector_store %arg4[%c0_22, %c0_23, %c1_24], %7 {strides = array<i32>} : memref<4x9x18xf32, #tpu.memory_space<vmem>>, vector<4x9x16xf32>,
    %c0_25 = arith.constant 0 : index
    %c0_26 = arith.constant 0 : index
    %c0_27 = arith.constant 0 : index
    %12 = vector.load %arg4[%c0_25, %c0_26, %c0_27] : memref<4x9x18xf32, #tpu.memory_space<vmem>>, vector<4x9x17xf32>
    %c0_28 = arith.constant 0 : index
    %c0_29 = arith.constant 0 : index
    %c1_30 = arith.constant 1 : index
    %13 = vector.load %arg4[%c0_28, %c0_29, %c1_30] : memref<4x9x18xf32, #tpu.memory_space<vmem>>, vector<4x9x17xf32>
    %14 = arith.maximumf %12, %13 : vector<4x9x17xf32>
    %15 = tpu.iota {dimensions = array<i32: 0>} : vector<17x9xi32>
    %16 = tpu.iota {dimensions = array<i32: 1>} : vector<17x9xi32>
    %c2_i32 = arith.constant 2 : i32
    %17 = vector.broadcast %c2_i32 : i32 to vector<17x9xi32>
    %18 = arith.muli %17, %16 : vector<17x9xi32>
    %19 = arith.cmpi eq, %15, %18 : vector<17x9xi32>
    %20 = arith.extui %19 : vector<17x9xi1> to vector<17x9xi32>
    %21 = arith.sitofp %20 : vector<17x9xi32> to vector<17x9xf32>
    %22 = vector.shape_cast %21 : vector<17x9xf32> to vector<1x17x9xf32>
    %23 = vector.broadcast %22 : vector<1x17x9xf32> to vector<4x17x9xf32>
    "tpu.trace_start"() <{level = 10 : i32, message = "bom,bmq->boq"}> : () -> ()
    %cst_31 = arith.constant dense<0.000000e+00> : vector<4x9x9xf32>
    %24 = tpu.matmul %14, %23, %cst_31 {dimension_numbers = #tpu.dot_dimension_numbers<[2], [1], [1], [2], [0, 0, 0, 1, 1, 2], [0], [0]>, precision = #tpu.contract_precision<fp32>} : vector<4x9x17xf32>, vector<4x17x9xf32>, vector<4x9x9xf32> -> vector<4x9x9xf32>
    "tpu.trace_stop"() : () -> ()
    %c0_32 = arith.constant 0 : index
    %c0_33 = arith.constant 0 : index
    %c0_34 = arith.constant 0 : index
    %25 = vector.load %arg2[%c0_32, %c0_33, %c0_34] : memref<4x9x9xf32, #tpu.memory_space<vmem>>, vector<4x9x9xf32>
    tpu.vector_store %arg2[%c0_32, %c0_33, %c0_34], %24 {strides = array<i32>} : memref<4x9x9xf32, #tpu.memory_space<vmem>>, vector<4x9x9xf32>,
    return
  }
  func.func @transform_0(%arg0: i32) -> (i32, i32, i32) {
    %c0_i32 = arith.constant 0 : i32
    %c0_i32_0 = arith.constant 0 : i32
    %c0_i32_1 = arith.constant 0 : i32
    return %arg0, %c0_i32, %c0_i32_0 : i32, i32, i32
  }
  func.func @transform_1(%arg0: i32) -> (i32, i32, i32) {
    %c0_i32 = arith.constant 0 : i32
    %c0_i32_0 = arith.constant 0 : i32
    %c0_i32_1 = arith.constant 0 : i32
    return %arg0, %c0_i32, %c0_i32_0 : i32, i32, i32
  }
}

</mosaic_0001>

<llo_original>
// kernel: tpu_custom_call.1
$region0: #{tpu_custom_call.1}
  #allocation0 [shape = 'u32[]', space=smem, size = 0x4, offset = 0x4, fixed_abs, tag = 'smem constant byte address 0x4 - core index']
  #allocation1 [shape = 'u32[144,128]{1,0:T(1,128)}', space=vmem, size = 0x12000, scoped, tag = 'internal scratch']
  #allocation2 [shape = 'f32[4,18,16]{2,1,0:T(8,128)}', space=vmem, size = 0xc000, scoped, tag = 'scratch operand']
  #allocation3 [shape = 'f32[4,9,18]{2,1,0:T(8,128)}', space=vmem, size = 0x8000, scoped, tag = 'scratch operand']
  %s0 = inlined_call_operand.hbm [shape: f32[8,16,16], index: 0, kind: input, shape index: {}]
  %s1 = inlined_call_operand.vmem [shape: f32[8,9,9], index: 1, kind: output, shape index: {}]
  %s2 = sld [smem:[#allocation0]]
  $region41: #{tpu_custom_call.1} parent=0
    _
  %s4 = ssub.s32 1, %s2
  %s5 = scalar_select 0, %s4, %s2
  $region1: #{tpu_custom_call.1} parent=0
    #allocation4 [shape = 'u8[65536]{0}', space=vmem, size = 0x10000, scoped, tag = 'input window, operand 0']
    #allocation5 [shape = 's32[2]{0}', space=sflag, size = 0x8, scoped, tag = 'scoped memory for tpu_custom_call.1']
    %6 = vsyncpa [#allocation5], 0
    %s7 = scalar_lea.sflag [#allocation5], 1
    %8 = vsyncpa %s7, 0
    loop: start=0, step=1, limit=4
    $region2: #{tpu_custom_call.1} parent=1 // loop_pre_header
      _
    $region3: #{tpu_custom_call.1} parent=1 // loop_header
      %s10 = sphi 0, %s14
      %p11 = scmp.ge.s32.totalorder %s10, 4
      %s20 = sphi 0, %s22
      %s23 = sphi 0, %s20
      %s24 = sphi 0, %s23
      %s40 = sphi 0, %s24
      %s46 = sphi 0, %s48
      %s49 = sphi 0, %s46
      %s50 = sphi 0, %s49
      %s66 = sphi 0, %s50
    $region4: #{tpu_custom_call.1} parent=1 // loop_header_branch
      %13 = sbr.rel (%p11) target = $region8
    $region5: #{tpu_custom_call.1} parent=1 // loop_body
      %s15 = ssub.s32 %s10, 1
      %s16 = ssub.s32 %s10, 2
      %s17 = sadd.s32 %s10, 1
      %s18 = ssub.s32 %s10, %s17
      %p19 = scmp.eq.s32.totalorder %s18, 0
      %s21 = sadd.s32 %s20, 1
      %s22 = scalar_select %p19, %s20, %s21
      %p25 = pneg %p19
      %p26 = scmp.eq.s32.totalorder %s10, 1
      %p27 = por %p25, %p26
      %p28 = scmp.ne.s32.totalorder %s20, %s23
      %p29 = scmp.eq.s32.totalorder %s10, 0
      %p30 = por %p28, %p29
      %p31 = scmp.ne.s32.totalorder %s20, %s23
      %p32 = scmp.eq.s32.totalorder %s15, 1
      %p33 = por %p31, %p32
      %p34 = scmp.ne.s32.totalorder %s23, %s24
      %p35 = scmp.eq.s32.totalorder %s15, 0
      %p36 = por %p34, %p35
      %p37 = scmp.ne.s32.totalorder %s23, %s24
      %p38 = scmp.eq.s32.totalorder %s16, 1
      %p39 = por %p37, %p38
      %p41 = scmp.ne.s32.totalorder %s24, %s40
      %p42 = scmp.eq.s32.totalorder %s16, 0
      %p43 = por %p41, %p42
      %s44 = ssub.s32 %s10, %s17
      %p45 = scmp.eq.s32.totalorder %s44, 0
      %s47 = sadd.s32 %s46, 1
      %s48 = scalar_select %p45, %s46, %s47
      %p51 = pneg %p45
      %p52 = scmp.eq.s32.totalorder %s10, 1
      %p53 = por %p51, %p52
      %p54 = scmp.ne.s32.totalorder %s46, %s49
      %p55 = scmp.eq.s32.totalorder %s10, 0
      %p56 = por %p54, %p55
      %p57 = scmp.ne.s32.totalorder %s46, %s49
      %p58 = scmp.eq.s32.totalorder %s15, 1
      %p59 = por %p57, %p58
      %p60 = scmp.ne.s32.totalorder %s49, %s50
      %p61 = scmp.eq.s32.totalorder %s15, 0
      %p62 = por %p60, %p61
      %p63 = scmp.ne.s32.totalorder %s49, %s50
      %p64 = scmp.eq.s32.totalorder %s16, 1
      %p65 = por %p63, %p64
      %p67 = scmp.ne.s32.totalorder %s50, %s66
      %p68 = scmp.eq.s32.totalorder %s16, 0
      %p69 = por %p67, %p68
      %p70 = scmp.le.s32.totalorder 1, %s10
      %p71 = scmp.lt.s32.totalorder %s10, 3
      %p72 = pnand %p70, %p71
      %p73 = pneg %p72
      // Predicated region
      $region9: #{tpu_custom_call.1} parent=5 // pred_check
        _
      $region10: #{tpu_custom_call.1} parent=5 // pred_check_branch
        %75 = sbr.rel (%p72) target = $region12
      $region11: #{tpu_custom_call.1} parent=5 // pred_region
        %s76 = ssub.s32 %s10, 1
      $region12: #{tpu_custom_call.1} parent=5 // pred_fallthru
        _
      %p77 = scmp.lt.s32.totalorder %s10, 2
      // Predicated region
      $region13: #{tpu_custom_call.1} parent=5 // pred_check
        %p78 = pneg %p77
      $region14: #{tpu_custom_call.1} parent=5 // pred_check_branch
        %80 = sbr.rel (%p78) target = $region16
      $region15: #{tpu_custom_call.1} parent=5 // pred_region
        // Predicated region
        $region17: #{tpu_custom_call.1} parent=15 // pred_check
          %p81 = pneg %p30
        $region18: #{tpu_custom_call.1} parent=15 // pred_check_branch
          %83 = sbr.rel (%p81) target = $region20
        $region19: #{tpu_custom_call.1} parent=15 // pred_region
          %s84 = sand.u32 %s20, 1
          %s85 = scalar_lea.sflag [#allocation5], %s84
          %s86 = sand.u32 %s20, 1
          %s87 = smul.addr %s86, 64
          %s88 = scalar_lea.vmem [#allocation4], %s87
          %s89 = smul.u32 4, %s10
          %s91 = ssub.s32 1024, 1024
          %92 = vsyncadd %s85, %s91
          %s93 = smul.addr %s89, 2
          %s94 = smul.addr %s93, 128
          %s95 = scalar_lea.hbm %s0, %s94
          %s96 = sshll.u32 %s88, 4
          %s97 = int_to_ptr.vmem [resolvable:$true] %s96
          %102 = dma.hbm_to_vmem [thread:$0]  %s95, 1024, %s97, %s85, 128, 128, 8
        $region20: #{tpu_custom_call.1} parent=15 // pred_fallthru
          _
      $region16: #{tpu_custom_call.1} parent=5 // pred_fallthru
        _
      %p103 = scmp.le.s32.totalorder 1, %s10
      %p104 = scmp.lt.s32.totalorder %s10, 3
      %p105 = pnand %p103, %p104
      %p106 = pneg %p105
      // Predicated region
      $region21: #{tpu_custom_call.1} parent=5 // pred_check
        _
      $region22: #{tpu_custom_call.1} parent=5 // pred_check_branch
        %108 = sbr.rel (%p105) target = $region24
      $region23: #{tpu_custom_call.1} parent=5 // pred_region
        %s109 = ssub.s32 %s10, 1
        %s110 = sand.u32 %s23, 1
        %s111 = scalar_lea.sflag [#allocation5], %s110
        %s112 = sand.u32 %s23, 1
        %s113 = smul.addr %s112, 64
        %s114 = scalar_lea.vmem [#allocation4], %s113
        // Predicated region
        $region25: #{tpu_custom_call.1} parent=23 // pred_check
          %p115 = pneg %p36
        $region26: #{tpu_custom_call.1} parent=23 // pred_check_branch
          %117 = sbr.rel (%p115) target = $region28
        $region27: #{tpu_custom_call.1} parent=23 // pred_region
          %118 = dma.done %s111, 1024
        $region28: #{tpu_custom_call.1} parent=23 // pred_fallthru
          _
        %s119 = sand.u32 %s23, 1
        %s120 = scalar_lea.sflag [#allocation5], %s119
        %s121 = sand.u32 %s23, 1
        %s122 = smul.addr %s121, 64
        %s123 = scalar_lea.vmem [#allocation4], %s122
        %p124 = pneg %p36
        %p125 = pneg %p33
        %p126 = pneg %p62
        %p127 = pneg %p59
        %s128 = smul.u32 4, %s15
        %p129 = scmp.lt.s32.totalorder %s128, 7
        %s130 = scalar_select %p129, %s128, 7
        %s131 = smul.addr %s130, 2
        %s132 = smul.addr %s131, 8
        %s133 = scalar_lea.vmem %s1, %s132
        %s134 = smul.u32 4, %s15
        %s135 = smul.u32 4, %s15
        %p136 = scmp.lt.s32.totalorder %s135, 7
        %s137 = scalar_select %p136, %s135, 7
        %s138 = smul.addr %s137, 2
        %s139 = smul.addr %s138, 8
        %s140 = scalar_lea.vmem %s1, %s139
        %s141 = smul.u32 4, %s15
        %vm142 = vcmask 122880
        %143 = vst.msk [vmem:[#allocation2] sm:$0x1] %vm142, -3.4028235e+38
        %144 = vst.msk [vmem:[#allocation2 + $0x18] sm:$0x1] %vm142, -3.4028235e+38
        %145 = vst.msk [vmem:[#allocation2 + $0x30] sm:$0x1] %vm142, -3.4028235e+38
        %146 = vst.msk [vmem:[#allocation2 + $0x48] sm:$0x1] %vm142, -3.4028235e+38
        %147 = vst.msk [vmem:[#allocation2 + $0x11] sm:$0x1] %vm142, -3.4028235e+38
        %148 = vst.msk [vmem:[#allocation2 + $0x29] sm:$0x1] %vm142, -3.4028235e+38
        %149 = vst.msk [vmem:[#allocation2 + $0x41] sm:$0x1] %vm142, -3.4028235e+38
        %150 = vst.msk [vmem:[#allocation2 + $0x59] sm:$0x1] %vm142, -3.4028235e+38
        %v151 = vld [vmem:[%s114] sm:$0xff]
        %v152 = vld [vmem:[%s114 + $0x8] sm:$0xff]
        %v153 = vld [vmem:[%s114 + $0x10] sm:$0xff]
        %v154 = vld [vmem:[%s114 + $0x18] sm:$0xff]
        %v155 = vld [vmem:[%s114 + $0x20] sm:$0xff]
        %v156 = vld [vmem:[%s114 + $0x28] sm:$0xff]
        %v157 = vld [vmem:[%s114 + $0x30] sm:$0xff]
        %v158 = vld [vmem:[%s114 + $0x38] sm:$0xff]
        %vm159 = vcmask 130048
        %160 = vst.msk [vmem:[#allocation2 + $0x1] sm:$0xff] %vm159, %v151
        %161 = vst.msk [vmem:[#allocation2 + $0x9] sm:$0xff] %vm159, %v152
        %162 = vst.msk [vmem:[#allocation2 + $0x19] sm:$0xff] %vm159, %v153
        %163 = vst.msk [vmem:[#allocation2 + $0x21] sm:$0xff] %vm159, %v154
        %164 = vst.msk [vmem:[#allocation2 + $0x31] sm:$0xff] %vm159, %v155
        %165 = vst.msk [vmem:[#allocation2 + $0x39] sm:$0xff] %vm159, %v156
        %166 = vst.msk [vmem:[#allocation2 + $0x49] sm:$0xff] %vm159, %v157
        %167 = vst.msk [vmem:[#allocation2 + $0x51] sm:$0xff] %vm159, %v158
        %v168 = vld [vmem:[#allocation2] ss:$2 sm:$0xff]
        %s169 = scalar_lea.vmem [#allocation2], 16
        %v170 = vld [vmem:[%s169] ss:$2 sm:$0x1]
        %s171 = scalar_lea.vmem [#allocation2], 24
        %v172 = vld [vmem:[%s171] ss:$2 sm:$0xff]
        %s173 = scalar_lea.vmem [#allocation2], 40
        %v174 = vld [vmem:[%s173] ss:$2 sm:$0x1]
        %s175 = scalar_lea.vmem [#allocation2], 48
        %v176 = vld [vmem:[%s175] ss:$2 sm:$0xff]
        %s177 = scalar_lea.vmem [#allocation2], 64
        %v178 = vld [vmem:[%s177] ss:$2 sm:$0x1]
        %s179 = scalar_lea.vmem [#allocation2], 72
        %v180 = vld [vmem:[%s179] ss:$2 sm:$0xff]
        %s181 = scalar_lea.vmem [#allocation2], 88
        %v182 = vld [vmem:[%s181] ss:$2 sm:$0x1]
        %s183 = scalar_lea.vmem [#allocation2], 1
        %v184 = vld [vmem:[%s183] ss:$2 sm:$0xff]
        %s185 = scalar_lea.vmem [#allocation2], 17
        %v186 = vld [vmem:[%s185] ss:$2 sm:$0x1]
        %s187 = scalar_lea.vmem [#allocation2], 25
        %v188 = vld [vmem:[%s187] ss:$2 sm:$0xff]
        %s189 = scalar_lea.vmem [#allocation2], 41
        %v190 = vld [vmem:[%s189] ss:$2 sm:$0x1]
        %s191 = scalar_lea.vmem [#allocation2], 49
        %v192 = vld [vmem:[%s191] ss:$2 sm:$0xff]
        %s193 = scalar_lea.vmem [#allocation2], 65
        %v194 = vld [vmem:[%s193] ss:$2 sm:$0x1]
        %s195 = scalar_lea.vmem [#allocation2], 73
        %v196 = vld [vmem:[%s195] ss:$2 sm:$0xff]
        %s197 = scalar_lea.vmem [#allocation2], 89
        %v198 = vld [vmem:[%s197] ss:$2 sm:$0x1]
        %v199 = vmax.f32 %v168, %v184
        %v200 = vmax.f32 %v170, %v186
        %v201 = vmax.f32 %v172, %v188
        %v202 = vmax.f32 %v174, %v190
        %v203 = vmax.f32 %v176, %v192
        %v204 = vmax.f32 %v178, %v194
        %v205 = vmax.f32 %v180, %v196
        %v206 = vmax.f32 %v182, %v198
        %vm207 = vcmask 7168
        %208 = vst.msk [vmem:[#allocation3] sm:$0xff] %vm207, -3.4028235e+38
        %vm209 = vcmask 0
        %210 = vst.msk [vmem:[#allocation3 + $0x8] sm:$0x1] %vm209, -3.4028235e+38
        %211 = vst.msk [vmem:[#allocation3 + $0x10] sm:$0xff] %vm207, -3.4028235e+38
        %212 = vst.msk [vmem:[#allocation3 + $0x18] sm:$0x1] %vm209, -3.4028235e+38
        %213 = vst.msk [vmem:[#allocation3 + $0x20] sm:$0xff] %vm207, -3.4028235e+38
        %214 = vst.msk [vmem:[#allocation3 + $0x28] sm:$0x1] %vm209, -3.4028235e+38
        %215 = vst.msk [vmem:[#allocation3 + $0x30] sm:$0xff] %vm207, -3.4028235e+38
        %216 = vst.msk [vmem:[#allocation3 + $0x38] sm:$0x1] %vm209, -3.4028235e+38
        %vm217 = vcmask 146568
        %218 = vst.msk [vmem:[#allocation3] sm:$0xff] %vm217, -3.4028235e+38
        %vm219 = vcmask 139400
        %220 = vst.msk [vmem:[#allocation3 + $0x8] sm:$0x1] %vm219, -3.4028235e+38
        %221 = vst.msk [vmem:[#allocation3 + $0x10] sm:$0xff] %vm217, -3.4028235e+38
        %222 = vst.msk [vmem:[#allocation3 + $0x18] sm:$0x1] %vm219, -3.4028235e+38
        %223 = vst.msk [vmem:[#allocation3 + $0x20] sm:$0xff] %vm217, -3.4028235e+38
        %224 = vst.msk [vmem:[#allocation3 + $0x28] sm:$0x1] %vm219, -3.4028235e+38
        %225 = vst.msk [vmem:[#allocation3 + $0x30] sm:$0xff] %vm217, -3.4028235e+38
        %226 = vst.msk [vmem:[#allocation3 + $0x38] sm:$0x1] %vm219, -3.4028235e+38
        %235 = vrot.lane.b32.xlu0 %v199, 1
        %v236 = vpop.permute.xlu0 %235
        %237 = vrot.lane.b32.xlu0 %v200, 1
        %v238 = vpop.permute.xlu0 %237
        %239 = vrot.lane.b32.xlu0 %v201, 1
        %v240 = vpop.permute.xlu0 %239
        %241 = vrot.lane.b32.xlu0 %v202, 1
        %v242 = vpop.permute.xlu0 %241
        %243 = vrot.lane.b32.xlu0 %v203, 1
        %v244 = vpop.permute.xlu0 %243
        %245 = vrot.lane.b32.xlu0 %v204, 1
        %v246 = vpop.permute.xlu0 %245
        %247 = vrot.lane.b32.xlu0 %v205, 1
        %v248 = vpop.permute.xlu0 %247
        %249 = vrot.lane.b32.xlu0 %v206, 1
        %v250 = vpop.permute.xlu0 %249
        %vm259 = vcmask 138248
        %260 = vst.msk [vmem:[#allocation3] sm:$0xff] %vm259, %v236
        %vm261 = vcmask 131080
        %262 = vst.msk [vmem:[#allocation3 + $0x8] sm:$0x1] %vm261, %v238
        %263 = vst.msk [vmem:[#allocation3 + $0x10] sm:$0xff] %vm259, %v240
        %264 = vst.msk [vmem:[#allocation3 + $0x18] sm:$0x1] %vm261, %v242
        %265 = vst.msk [vmem:[#allocation3 + $0x20] sm:$0xff] %vm259, %v244
        %266 = vst.msk [vmem:[#allocation3 + $0x28] sm:$0x1] %vm261, %v246
        %267 = vst.msk [vmem:[#allocation3 + $0x30] sm:$0xff] %vm259, %v248
        %268 = vst.msk [vmem:[#allocation3 + $0x38] sm:$0x1] %vm261, %v250
        %v269 = vld [vmem:[#allocation3] sm:$0xff]
        %v270 = vld [vmem:[#allocation3 + $0x8] sm:$0x1]
        %v271 = vld [vmem:[#allocation3 + $0x10] sm:$0xff]
        %v272 = vld [vmem:[#allocation3 + $0x18] sm:$0x1]
        %v273 = vld [vmem:[#allocation3 + $0x20] sm:$0xff]
        %v274 = vld [vmem:[#allocation3 + $0x28] sm:$0x1]
        %v275 = vld [vmem:[#allocation3 + $0x30] sm:$0xff]
        %v276 = vld [vmem:[#allocation3 + $0x38] sm:$0x1]
        %285 = vrot.lane.b32.xlu0 %v269, 127
        %v286 = vpop.permute.xlu0 %285
        %287 = vrot.lane.b32.xlu0 %v270, 127
        %v288 = vpop.permute.xlu0 %287
        %289 = vrot.lane.b32.xlu0 %v271, 127
        %v290 = vpop.permute.xlu0 %289
        %291 = vrot.lane.b32.xlu0 %v272, 127
        %v292 = vpop.permute.xlu0 %291
        %293 = vrot.lane.b32.xlu0 %v273, 127
        %v294 = vpop.permute.xlu0 %293
        %295 = vrot.lane.b32.xlu0 %v274, 127
        %v296 = vpop.permute.xlu0 %295
        %297 = vrot.lane.b32.xlu0 %v275, 127
        %v298 = vpop.permute.xlu0 %297
        %299 = vrot.lane.b32.xlu0 %v276, 127
        %v300 = vpop.permute.xlu0 %299
        %v309 = vmax.f32 %v269, %v286
        %v310 = vmax.f32 %v270, %v288
        %v311 = vmax.f32 %v271, %v290
        %v312 = vmax.f32 %v272, %v292
        %v313 = vmax.f32 %v273, %v294
        %v314 = vmax.f32 %v274, %v296
        %v315 = vmax.f32 %v275, %v298
        %v316 = vmax.f32 %v276, %v300
        %v317 = vlaneseq
        %v318 = vshrl.u32 %v317, 7
        %v319 = vadd.s32 %v318, 8
        %v320 = vadd.s32 %v318, 16
        %v321 = vlaneseq
        %v322 = vand.u32 %v321, 127
        %v323 = vmul.u32 %v322, 2
        %vm324 = vcmp.eq.s32.totalorder %v318, %v323
        %vm325 = vcmp.eq.s32.totalorder %v319, %v323
        %vm326 = vcmp.eq.s32.totalorder %v320, %v323
        %v327 = vsel %vm324, 1, 0
        %v328 = vsel %vm325, 1, 0
        %v329 = vsel %vm326, 1, 0
        %v330 = vcvt.s32.f32 %v327
        %v331 = vcvt.s32.f32 %v328
        %v332 = vcvt.s32.f32 %v329
        %vm333 = vcmask 138240
        %v335 = vsel %vm333, %v309, 0
        %v338 = vsel %vm333, %v310, 0
        %vm340 = vcmask 1040384
        %v342 = vsel %vm340, %v332, 0
        %344 = vmatprep.subr.mxu0 0.0
        %v345 = vand.u32 %v330, 4294901760
        %346 = vmatpush1.msra.mxu0 %v345
        %347 = vmatprep.subr.mxu0 0.0
        %v348 = vand.u32 %v331, 4294901760
        %349 = vmatpush1.msra.mxu0 %v348
        %350 = vmatprep.subr.mxu0 0.0
        %v351 = vand.u32 %v342, 4294901760
        %352 = vmatpush1.msra.mxu0 %v351
        %353 = vmatprep.subr.mxu0 0.0
        %354 = vmatpush1.msra.mxu0 0.0
        %355 = vmatprep.subr.mxu0 0.0
        %356 = vmatpush1.msra.mxu0 0.0
        %357 = vmatprep.subr.mxu0 0.0
        %358 = vmatpush1.msra.mxu0 0.0
        %359 = vmatprep.subr.mxu0 0.0
        %360 = vmatpush1.msra.mxu0 0.0
        %361 = vmatprep.subr.mxu0 0.0
        %362 = vmatpush1.msra.mxu0 0.0
        %363 = vmatprep.subr.mxu0 0.0
        %364 = vmatpush1.msra.mxu0 0.0
        %365 = vmatprep.subr.mxu0 0.0
        %366 = vmatpush1.msra.mxu0 0.0
        %367 = vmatprep.subr.mxu0 0.0
        %368 = vmatpush1.msra.mxu0 0.0
        %369 = vmatprep.subr.mxu0 0.0
        %370 = vmatpush1.msra.mxu0 0.0
        %371 = vmatprep.subr.mxu0 0.0
        %372 = vmatpush1.msra.mxu0 0.0
        %373 = vmatprep.subr.mxu0 0.0
        %374 = vmatpush1.msra.mxu0 0.0
        %375 = vmatprep.subr.mxu0 0.0
        %376 = vmatpush1.msra.mxu0 0.0
        %377 = vmatprep.subr.mxu0 0.0
        %378 = vmatpush1.msra.mxu0 0.0
        %379 = vmatprep.subr.mxu0 0.0
        %380 = vmatpush1.msra.mxu0 0.0
        %381 = vmatprep.subr.mxu0 0.0
        %382 = vmatpush1.msra.mxu0 0.0
        %383 = vmatprep.subr.mxu0 0.0
        %384 = vmatpush1.msra.mxu0 0.0
        %385 = vmatprep.subr.mxu0 0.0
        %386 = vmatpush1.msra.mxu0 0.0
        %387 = vmatprep.subr.mxu0 0.0
        %388 = vmatpush1.msra.mxu0 0.0
        %389 = vmatprep.subr.mxu0 0.0
        %390 = vmatpush1.msra.mxu0 0.0
        %391 = vmatprep.subr.mxu0 0.0
        %392 = vmatpush1.msra.mxu0 0.0
        %393 = vmatprep.subr.mxu0 0.0
        %394 = vmatpush1.msra.mxu0 0.0
        %395 = vmatprep.subr.mxu0 0.0
        %396 = vmatpush1.msra.mxu0 0.0
        %397 = vmatprep.subr.mxu0 0.0
        %398 = vmatpush1.msra.mxu0 0.0
        %399 = vmatprep.subr.mxu0 0.0
        %400 = vmatpush1.msra.mxu0 0.0
        %401 = vmatprep.subr.mxu0 0.0
        %402 = vmatpush1.msra.mxu0 0.0
        %403 = vmatprep.subr.mxu0 0.0
        %404 = vmatpush1.msra.mxu0 0.0
        %405 = vmatprep.subr.mxu0 0.0
        %406 = vmatpush1.msra.mxu0 0.0
        %407 = vmatprep.subr.mxu0 0.0
        %408 = vmatpush1.msra.mxu0 0.0
        %409 = vmatprep.subr.mxu0 0.0
        %410 = vmatpush1.msra.mxu0 0.0
        %411 = vmatprep.mubr.f32.mxu0 0.0
        %v412 = vand.u32 %v335, 4294901760
        %v413 = vsub.f32 %v335, %v412
        %v414 = vand.u32 %v413, 4294901760
        %v415 = vsub.f32 %v413, %v414
        %v416 = vand.u32 %v415, 4294901760
        %417 = vmatmul.mubr.f32.gmra.mrb[0].mxu0 %v416
        %v418 = vpop.f32.mrb[0].mxu0
        %v419 = vadd.f32 0.0, %v418
        %v420 = vpop.f32.mrb[0].mxu0
        %421 = vmatprep.mubr.f32.mxu0 0.0
        %v422 = vand.u32 %v338, 4294901760
        %v423 = vsub.f32 %v338, %v422
        %v424 = vand.u32 %v423, 4294901760
        %v425 = vsub.f32 %v423, %v424
        %v426 = vand.u32 %v425, 4294901760
        %427 = vmatmul.mubr.f32.gmra.mrb[0].mxu0 %v426
        %v428 = vpop.f32.mrb[0].mxu0
        %v429 = vadd.f32 0.0, %v428
        %v430 = vpop.f32.mrb[0].mxu0
        %431 = vdwg.mxu0
        %432 = vmatprep.subr.mxu0 0.0
        %v433 = vand.u32 %v330, 4294901760
        %v434 = vsub.f32 %v330, %v433
        %v435 = vand.u32 %v434, 4294901760
        %v436 = vsub.f32 %v434, %v435
        %v437 = vand.u32 %v436, 4294901760
        %438 = vmatpush1.msra.mxu0 %v437
        %439 = vmatprep.subr.mxu0 0.0
        %v440 = vand.u32 %v331, 4294901760
        %v441 = vsub.f32 %v331, %v440
        %v442 = vand.u32 %v441, 4294901760
        %v443 = vsub.f32 %v441, %v442
        %v444 = vand.u32 %v443, 4294901760
        %445 = vmatpush1.msra.mxu0 %v444
        %446 = vmatprep.subr.mxu0 0.0
        %v447 = vand.u32 %v342, 4294901760
        %v448 = vsub.f32 %v342, %v447
        %v449 = vand.u32 %v448, 4294901760
        %v450 = vsub.f32 %v448, %v449
        %v451 = vand.u32 %v450, 4294901760
        %452 = vmatpush1.msra.mxu0 %v451
        %453 = vmatprep.subr.mxu0 0.0
        %454 = vmatpush1.msra.mxu0 0.0
        %455 = vmatprep.subr.mxu0 0.0
        %456 = vmatpush1.msra.mxu0 0.0
        %457 = vmatprep.subr.mxu0 0.0
        %458 = vmatpush1.msra.mxu0 0.0
        %459 = vmatprep.subr.mxu0 0.0
        %460 = vmatpush1.msra.mxu0 0.0
        %461 = vmatprep.subr.mxu0 0.0
        %462 = vmatpush1.msra.mxu0 0.0
        %463 = vmatprep.subr.mxu0 0.0
        %464 = vmatpush1.msra.mxu0 0.0
        %465 = vmatprep.subr.mxu0 0.0
        %466 = vmatpush1.msra.mxu0 0.0
        %467 = vmatprep.subr.mxu0 0.0
        %468 = vmatpush1.msra.mxu0 0.0
        %469 = vmatprep.subr.mxu0 0.0
        %470 = vmatpush1.msra.mxu0 0.0
        %471 = vmatprep.subr.mxu0 0.0
        %472 = vmatpush1.msra.mxu0 0.0
        %473 = vmatprep.subr.mxu0 0.0
        %474 = vmatpush1.msra.mxu0 0.0
        %475 = vmatprep.subr.mxu0 0.0
        %476 = vmatpush1.msra.mxu0 0.0
        %477 = vmatprep.subr.mxu0 0.0
        %478 = vmatpush1.msra.mxu0 0.0
        %479 = vmatprep.subr.mxu0 0.0
        %480 = vmatpush1.msra.mxu0 0.0
        %481 = vmatprep.subr.mxu0 0.0
        %482 = vmatpush1.msra.mxu0 0.0
        %483 = vmatprep.subr.mxu0 0.0
        %484 = vmatpush1.msra.mxu0 0.0
        %485 = vmatprep.subr.mxu0 0.0
        %486 = vmatpush1.msra.mxu0 0.0
        %487 = vmatprep.subr.mxu0 0.0
        %488 = vmatpush1.msra.mxu0 0.0
        %489 = vmatprep.subr.mxu0 0.0
        %490 = vmatpush1.msra.mxu0 0.0
        %491 = vmatprep.subr.mxu0 0.0
        %492 = vmatpush1.msra.mxu0 0.0
        %493 = vmatprep.subr.mxu0 0.0
        %494 = vmatpush1.msra.mxu0 0.0
        %495 = vmatprep.subr.mxu0 0.0
        %496 = vmatpush1.msra.mxu0 0.0
        %497 = vmatprep.subr.mxu0 0.0
        %498 = vmatpush1.msra.mxu0 0.0
        %499 = vmatprep.subr.mxu0 0.0
        %500 = vmatpush1.msra.mxu0 0.0
        %501 = vmatprep.subr.mxu0 0.0
        %502 = vmatpush1.msra.mxu0 0.0
        %503 = vmatprep.subr.mxu0 0.0
        %504 = vmatpush1.msra.mxu0 0.0
        %505 = vmatprep.subr.mxu0 0.0
        %506 = vmatpush1.msra.mxu0 0.0
        %507 = vmatprep.subr.mxu0 0.0
        %508 = vmatpush1.msra.mxu0 0.0
        %509 = vmatprep.subr.mxu0 0.0
        %510 = vmatpush1.msra.mxu0 0.0
        %511 = vmatprep.mubr.f32.mxu0 0.0
        %v512 = vand.u32 %v335, 4294901760
        %513 = vmatmul.mubr.f32.gmra.mrb[0].mxu0 %v512
        %v514 = vpop.f32.mrb[0].mxu0
        %v515 = vadd.f32 %v419, %v514
        %v516 = vpop.f32.mrb[0].mxu0
        %517 = vmatprep.mubr.f32.mxu0 0.0
        %v518 = vand.u32 %v338, 4294901760
        %519 = vmatmul.mubr.f32.gmra.mrb[0].mxu0 %v518
        %v520 = vpop.f32.mrb[0].mxu0
        %v521 = vadd.f32 %v429, %v520
        %v522 = vpop.f32.mrb[0].mxu0
        %523 = vdwg.mxu0
        %524 = vmatprep.subr.mxu0 0.0
        %v525 = vand.u32 %v330, 4294901760
        %v526 = vsub.f32 %v330, %v525
        %527 = vmatpush1.msra.mxu0 %v526
        %528 = vmatprep.subr.mxu0 0.0
        %v529 = vand.u32 %v331, 4294901760
        %v530 = vsub.f32 %v331, %v529
        %531 = vmatpush1.msra.mxu0 %v530
        %532 = vmatprep.subr.mxu0 0.0
        %v533 = vand.u32 %v342, 4294901760
        %v534 = vsub.f32 %v342, %v533
        %535 = vmatpush1.msra.mxu0 %v534
        %536 = vmatprep.subr.mxu0 0.0
        %537 = vmatpush1.msra.mxu0 0.0
        %538 = vmatprep.subr.mxu0 0.0
        %539 = vmatpush1.msra.mxu0 0.0
        %540 = vmatprep.subr.mxu0 0.0
        %541 = vmatpush1.msra.mxu0 0.0
        %542 = vmatprep.subr.mxu0 0.0
        %543 = vmatpush1.msra.mxu0 0.0
        %544 = vmatprep.subr.mxu0 0.0
        %545 = vmatpush1.msra.mxu0 0.0
        %546 = vmatprep.subr.mxu0 0.0
        %547 = vmatpush1.msra.mxu0 0.0
        %548 = vmatprep.subr.mxu0 0.0
        %549 = vmatpush1.msra.mxu0 0.0
        %550 = vmatprep.subr.mxu0 0.0
        %551 = vmatpush1.msra.mxu0 0.0
        %552 = vmatprep.subr.mxu0 0.0
        %553 = vmatpush1.msra.mxu0 0.0
        %554 = vmatprep.subr.mxu0 0.0
        %555 = vmatpush1.msra.mxu0 0.0
        %556 = vmatprep.subr.mxu0 0.0
        %557 = vmatpush1.msra.mxu0 0.0
        %558 = vmatprep.subr.mxu0 0.0
        %559 = vmatpush1.msra.mxu0 0.0
        %560 = vmatprep.subr.mxu0 0.0
        %561 = vmatpush1.msra.mxu0 0.0
        %562 = vmatprep.subr.mxu0 0.0
        %563 = vmatpush1.msra.mxu0 0.0
        %564 = vmatprep.subr.mxu0 0.0
        %565 = vmatpush1.msra.mxu0 0.0
        %566 = vmatprep.subr.mxu0 0.0
        %567 = vmatpush1.msra.mxu0 0.0
        %568 = vmatprep.subr.mxu0 0.0
        %569 = vmatpush1.msra.mxu0 0.0
        %570 = vmatprep.subr.mxu0 0.0
        %571 = vmatpush1.msra.mxu0 0.0
        %572 = vmatprep.subr.mxu0 0.0
        %573 = vmatpush1.msra.mxu0 0.0
        %574 = vmatprep.subr.mxu0 0.0
        %575 = vmatpush1.msra.mxu0 0.0
        %576 = vmatprep.subr.mxu0 0.0
        %577 = vmatpush1.msra.mxu0 0.0
        %578 = vmatprep.subr.mxu0 0.0
        %579 = vmatpush1.msra.mxu0 0.0
        %580 = vmatprep.subr.mxu0 0.0
        %581 = vmatpush1.msra.mxu0 0.0
        %582 = vmatprep.subr.mxu0 0.0
        %583 = vmatpush1.msra.mxu0 0.0
        %584 = vmatprep.subr.mxu0 0.0
        %585 = vmatpush1.msra.mxu0 0.0
        %586 = vmatprep.subr.mxu0 0.0
        %587 = vmatpush1.msra.mxu0 0.0
        %588 = vmatprep.subr.mxu0 0.0
        %589 = vmatpush1.msra.mxu0 0.0
        %590 = vmatprep.subr.mxu0 0.0
        %591 = vmatpush1.msra.mxu0 0.0
        %592 = vmatprep.subr.mxu0 0.0
        %593 = vmatpush1.msra.mxu0 0.0
        %594 = vmatprep.mubr.f32.mxu0 0.0
        %v595 = vand.u32 %v335, 4294901760
        %v596 = vsub.f32 %v335, %v595
        %597 = vmatmul.mubr.f32.gmra.mrb[0].mxu0 %v596
        %v598 = vpop.f32.mrb[0].mxu0
        %v599 = vadd.f32 %v515, %v598
        %v600 = vpop.f32.mrb[0].mxu0
        %601 = vmatprep.mubr.f32.mxu0 0.0
        %v602 = vand.u32 %v338, 4294901760
        %v603 = vsub.f32 %v338, %v602
        %604 = vmatmul.mubr.f32.gmra.mrb[0].mxu0 %v603
        %v605 = vpop.f32.mrb[0].mxu0
        %v606 = vadd.f32 %v521, %v605
        %v607 = vpop.f32.mrb[0].mxu0
        %608 = vdwg.mxu0
        %609 = vmatprep.subr.mxu0 0.0
        %v610 = vand.u32 %v330, 4294901760
        %611 = vmatpush1.msra.mxu0 %v610
        %612 = vmatprep.subr.mxu0 0.0
        %v613 = vand.u32 %v331, 4294901760
        %614 = vmatpush1.msra.mxu0 %v613
        %615 = vmatprep.subr.mxu0 0.0
        %v616 = vand.u32 %v342, 4294901760
        %617 = vmatpush1.msra.mxu0 %v616
        %618 = vmatprep.subr.mxu0 0.0
        %619 = vmatpush1.msra.mxu0 0.0
        %620 = vmatprep.subr.mxu0 0.0
        %621 = vmatpush1.msra.mxu0 0.0
        %622 = vmatprep.subr.mxu0 0.0
        %623 = vmatpush1.msra.mxu0 0.0
        %624 = vmatprep.subr.mxu0 0.0
        %625 = vmatpush1.msra.mxu0 0.0
        %626 = vmatprep.subr.mxu0 0.0
        %627 = vmatpush1.msra.mxu0 0.0
        %628 = vmatprep.subr.mxu0 0.0
        %629 = vmatpush1.msra.mxu0 0.0
        %630 = vmatprep.subr.mxu0 0.0
        %631 = vmatpush1.msra.mxu0 0.0
        %632 = vmatprep.subr.mxu0 0.0
        %633 = vmatpush1.msra.mxu0 0.0
        %634 = vmatprep.subr.mxu0 0.0
        %635 = vmatpush1.msra.mxu0 0.0
        %636 = vmatprep.subr.mxu0 0.0
        %637 = vmatpush1.msra.mxu0 0.0
        %638 = vmatprep.subr.mxu0 0.0
        %639 = vmatpush1.msra.mxu0 0.0
        %640 = vmatprep.subr.mxu0 0.0
        %641 = vmatpush1.msra.mxu0 0.0
        %642 = vmatprep.subr.mxu0 0.0
        %643 = vmatpush1.msra.mxu0 0.0
        %644 = vmatprep.subr.mxu0 0.0
        %645 = vmatpush1.msra.mxu0 0.0
        %646 = vmatprep.subr.mxu0 0.0
        %647 = vmatpush1.msra.mxu0 0.0
        %648 = vmatprep.subr.mxu0 0.0
        %649 = vmatpush1.msra.mxu0 0.0
        %650 = vmatprep.subr.mxu0 0.0
        %651 = vmatpush1.msra.mxu0 0.0
        %652 = vmatprep.subr.mxu0 0.0
        %653 = vmatpush1.msra.mxu0 0.0
        %654 = vmatprep.subr.mxu0 0.0
        %655 = vmatpush1.msra.mxu0 0.0
        %656 = vmatprep.subr.mxu0 0.0
        %657 = vmatpush1.msra.mxu0 0.0
        %658 = vmatprep.subr.mxu0 0.0
        %659 = vmatpush1.msra.mxu0 0.0
        %660 = vmatprep.subr.mxu0 0.0
        %661 = vmatpush1.msra.mxu0 0.0
        %662 = vmatprep.subr.mxu0 0.0
        %663 = vmatpush1.msra.mxu0 0.0
        %664 = vmatprep.subr.mxu0 0.0
        %665 = vmatpush1.msra.mxu0 0.0
        %666 = vmatprep.subr.mxu0 0.0
        %667 = vmatpush1.msra.mxu0 0.0
        %668 = vmatprep.subr.mxu0 0.0
        %669 = vmatpush1.msra.mxu0 0.0
        %670 = vmatprep.subr.mxu0 0.0
        %671 = vmatpush1.msra.mxu0 0.0
        %672 = vmatprep.subr.mxu0 0.0
        %673 = vmatpush1.msra.mxu0 0.0
        %674 = vmatprep.subr.mxu0 0.0
        %675 = vmatpush1.msra.mxu0 0.0
        %676 = vmatprep.mubr.f32.mxu0 0.0
        %v677 = vand.u32 %v335, 4294901760
        %v678 = vsub.f32 %v335, %v677
        %v679 = vand.u32 %v678, 4294901760
        %680 = vmatmul.mubr.f32.gmra.mrb[0].mxu0 %v679
        %v681 = vpop.f32.mrb[0].mxu0
        %v682 = vadd.f32 %v599, %v681
        %v683 = vpop.f32.mrb[0].mxu0
        %684 = vmatprep.mubr.f32.mxu0 0.0
        %v685 = vand.u32 %v338, 4294901760
        %v686 = vsub.f32 %v338, %v685
        %v687 = vand.u32 %v686, 4294901760
        %688 = vmatmul.mubr.f32.gmra.mrb[0].mxu0 %v687
        %v689 = vpop.f32.mrb[0].mxu0
        %v690 = vadd.f32 %v606, %v689
        %v691 = vpop.f32.mrb[0].mxu0
        %692 = vdwg.mxu0
        %693 = vmatprep.subr.mxu0 0.0
        %v694 = vand.u32 %v330, 4294901760
        %v695 = vsub.f32 %v330, %v694
        %v696 = vand.u32 %v695, 4294901760
        %697 = vmatpush1.msra.mxu0 %v696
        %698 = vmatprep.subr.mxu0 0.0
        %v699 = vand.u32 %v331, 4294901760
        %v700 = vsub.f32 %v331, %v699
        %v701 = vand.u32 %v700, 4294901760
        %702 = vmatpush1.msra.mxu0 %v701
        %703 = vmatprep.subr.mxu0 0.0
        %v704 = vand.u32 %v342, 4294901760
        %v705 = vsub.f32 %v342, %v704
        %v706 = vand.u32 %v705, 4294901760
        %707 = vmatpush1.msra.mxu0 %v706
        %708 = vmatprep.subr.mxu0 0.0
        %709 = vmatpush1.msra.mxu0 0.0
        %710 = vmatprep.subr.mxu0 0.0
        %711 = vmatpush1.msra.mxu0 0.0
        %712 = vmatprep.subr.mxu0 0.0
        %713 = vmatpush1.msra.mxu0 0.0
        %714 = vmatprep.subr.mxu0 0.0
        %715 = vmatpush1.msra.mxu0 0.0
        %716 = vmatprep.subr.mxu0 0.0
        %717 = vmatpush1.msra.mxu0 0.0
        %718 = vmatprep.subr.mxu0 0.0
        %719 = vmatpush1.msra.mxu0 0.0
        %720 = vmatprep.subr.mxu0 0.0
        %721 = vmatpush1.msra.mxu0 0.0
        %722 = vmatprep.subr.mxu0 0.0
        %723 = vmatpush1.msra.mxu0 0.0
        %724 = vmatprep.subr.mxu0 0.0
        %725 = vmatpush1.msra.mxu0 0.0
        %726 = vmatprep.subr.mxu0 0.0
        %727 = vmatpush1.msra.mxu0 0.0
        %728 = vmatprep.subr.mxu0 0.0
        %729 = vmatpush1.msra.mxu0 0.0
        %730 = vmatprep.subr.mxu0 0.0
        %731 = vmatpush1.msra.mxu0 0.0
        %732 = vmatprep.subr.mxu0 0.0
        %733 = vmatpush1.msra.mxu0 0.0
        %734 = vmatprep.subr.mxu0 0.0
        %735 = vmatpush1.msra.mxu0 0.0
        %736 = vmatprep.subr.mxu0 0.0
        %737 = vmatpush1.msra.mxu0 0.0
        %738 = vmatprep.subr.mxu0 0.0
        %739 = vmatpush1.msra.mxu0 0.0
        %740 = vmatprep.subr.mxu0 0.0
        %741 = vmatpush1.msra.mxu0 0.0
        %742 = vmatprep.subr.mxu0 0.0
        %743 = vmatpush1.msra.mxu0 0.0
        %744 = vmatprep.subr.mxu0 0.0
        %745 = vmatpush1.msra.mxu0 0.0
        %746 = vmatprep.subr.mxu0 0.0
        %747 = vmatpush1.msra.mxu0 0.0
        %748 = vmatprep.subr.mxu0 0.0
        %749 = vmatpush1.msra.mxu0 0.0
        %750 = vmatprep.subr.mxu0 0.0
        %751 = vmatpush1.msra.mxu0 0.0
        %752 = vmatprep.subr.mxu0 0.0
        %753 = vmatpush1.msra.mxu0 0.0
        %754 = vmatprep.subr.mxu0 0.0
        %755 = vmatpush1.msra.mxu0 0.0
        %756 = vmatprep.subr.mxu0 0.0
        %757 = vmatpush1.msra.mxu0 0.0
        %758 = vmatprep.subr.mxu0 0.0
        %759 = vmatpush1.msra.mxu0 0.0
        %760 = vmatprep.subr.mxu0 0.0
        %761 = vmatpush1.msra.mxu0 0.0
        %762 = vmatprep.subr.mxu0 0.0
        %763 = vmatpush1.msra.mxu0 0.0
        %764 = vmatprep.subr.mxu0 0.0
        %765 = vmatpush1.msra.mxu0 0.0
        %766 = vmatprep.mubr.f32.mxu0 0.0
        %v767 = vand.u32 %v335, 4294901760
        %768 = vmatmul.mubr.f32.gmra.mrb[0].mxu0 %v767
        %v769 = vpop.f32.mrb[0].mxu0
        %v770 = vadd.f32 %v682, %v769
        %v771 = vpop.f32.mrb[0].mxu0
        %772 = vmatprep.mubr.f32.mxu0 0.0
        %v773 = vand.u32 %v338, 4294901760
        %774 = vmatmul.mubr.f32.gmra.mrb[0].mxu0 %v773
        %v775 = vpop.f32.mrb[0].mxu0
        %v776 = vadd.f32 %v690, %v775
        %v777 = vpop.f32.mrb[0].mxu0
        %778 = vdwg.mxu0
        %779 = vmatprep.subr.mxu0 0.0
        %v780 = vand.u32 %v330, 4294901760
        %781 = vmatpush1.msra.mxu0 %v780
        %782 = vmatprep.subr.mxu0 0.0
        %v783 = vand.u32 %v331, 4294901760
        %784 = vmatpush1.msra.mxu0 %v783
        %785 = vmatprep.subr.mxu0 0.0
        %v786 = vand.u32 %v342, 4294901760
        %787 = vmatpush1.msra.mxu0 %v786
        %788 = vmatprep.subr.mxu0 0.0
        %789 = vmatpush1.msra.mxu0 0.0
        %790 = vmatprep.subr.mxu0 0.0
        %791 = vmatpush1.msra.mxu0 0.0
        %792 = vmatprep.subr.mxu0 0.0
        %793 = vmatpush1.msra.mxu0 0.0
        %794 = vmatprep.subr.mxu0 0.0
        %795 = vmatpush1.msra.mxu0 0.0
        %796 = vmatprep.subr.mxu0 0.0
        %797 = vmatpush1.msra.mxu0 0.0
        %798 = vmatprep.subr.mxu0 0.0
        %799 = vmatpush1.msra.mxu0 0.0
        %800 = vmatprep.subr.mxu0 0.0
        %801 = vmatpush1.msra.mxu0 0.0
        %802 = vmatprep.subr.mxu0 0.0
        %803 = vmatpush1.msra.mxu0 0.0
        %804 = vmatprep.subr.mxu0 0.0
        %805 = vmatpush1.msra.mxu0 0.0
        %806 = vmatprep.subr.mxu0 0.0
        %807 = vmatpush1.msra.mxu0 0.0
        %808 = vmatprep.subr.mxu0 0.0
        %809 = vmatpush1.msra.mxu0 0.0
        %810 = vmatprep.subr.mxu0 0.0
        %811 = vmatpush1.msra.mxu0 0.0
        %812 = vmatprep.subr.mxu0 0.0
        %813 = vmatpush1.msra.mxu0 0.0
        %814 = vmatprep.subr.mxu0 0.0
        %815 = vmatpush1.msra.mxu0 0.0
        %816 = vmatprep.subr.mxu0 0.0
        %817 = vmatpush1.msra.mxu0 0.0
        %818 = vmatprep.subr.mxu0 0.0
        %819 = vmatpush1.msra.mxu0 0.0
        %820 = vmatprep.subr.mxu0 0.0
        %821 = vmatpush1.msra.mxu0 0.0
        %822 = vmatprep.subr.mxu0 0.0
        %823 = vmatpush1.msra.mxu0 0.0
        %824 = vmatprep.subr.mxu0 0.0
        %825 = vmatpush1.msra.mxu0 0.0
        %826 = vmatprep.subr.mxu0 0.0
        %827 = vmatpush1.msra.mxu0 0.0
        %828 = vmatprep.subr.mxu0 0.0
        %829 = vmatpush1.msra.mxu0 0.0
        %830 = vmatprep.subr.mxu0 0.0
        %831 = vmatpush1.msra.mxu0 0.0
        %832 = vmatprep.subr.mxu0 0.0
        %833 = vmatpush1.msra.mxu0 0.0
        %834 = vmatprep.subr.mxu0 0.0
        %835 = vmatpush1.msra.mxu0 0.0
        %836 = vmatprep.subr.mxu0 0.0
        %837 = vmatpush1.msra.mxu0 0.0
        %838 = vmatprep.subr.mxu0 0.0
        %839 = vmatpush1.msra.mxu0 0.0
        %840 = vmatprep.subr.mxu0 0.0
        %841 = vmatpush1.msra.mxu0 0.0
        %842 = vmatprep.subr.mxu0 0.0
        %843 = vmatpush1.msra.mxu0 0.0
        %844 = vmatprep.subr.mxu0 0.0
        %845 = vmatpush1.msra.mxu0 0.0
        %846 = vmatprep.mubr.f32.mxu0 0.0
        %v847 = vand.u32 %v335, 4294901760
        %848 = vmatmul.mubr.f32.gmra.mrb[0].mxu0 %v847
        %v849 = vpop.f32.mrb[0].mxu0
        %v850 = vadd.f32 %v770, %v849
        %v851 = vpop.f32.mrb[0].mxu0
        %852 = vmatprep.mubr.f32.mxu0 0.0
        %v853 = vand.u32 %v338, 4294901760
        %854 = vmatmul.mubr.f32.gmra.mrb[0].mxu0 %v853
        %v855 = vpop.f32.mrb[0].mxu0
        %v856 = vadd.f32 %v776, %v855
        %v857 = vpop.f32.mrb[0].mxu0
        %858 = vdwg.mxu0
        %v860 = vsel %vm333, %v311, 0
        %v863 = vsel %vm333, %v312, 0
        %865 = vmatprep.subr.mxu0 0.0
        %v866 = vand.u32 %v330, 4294901760
        %867 = vmatpush1.msra.mxu0 %v866
        %868 = vmatprep.subr.mxu0 0.0
        %v869 = vand.u32 %v331, 4294901760
        %870 = vmatpush1.msra.mxu0 %v869
        %871 = vmatprep.subr.mxu0 0.0
        %v872 = vand.u32 %v342, 4294901760
        %873 = vmatpush1.msra.mxu0 %v872
        %874 = vmatprep.subr.mxu0 0.0
        %875 = vmatpush1.msra.mxu0 0.0
        %876 = vmatprep.subr.mxu0 0.0
        %877 = vmatpush1.msra.mxu0 0.0
        %878 = vmatprep.subr.mxu0 0.0
        %879 = vmatpush1.msra.mxu0 0.0
        %880 = vmatprep.subr.mxu0 0.0
        %881 = vmatpush1.msra.mxu0 0.0
        %882 = vmatprep.subr.mxu0 0.0
        %883 = vmatpush1.msra.mxu0 0.0
        %884 = vmatprep.subr.mxu0 0.0
        %885 = vmatpush1.msra.mxu0 0.0
        %886 = vmatprep.subr.mxu0 0.0
        %887 = vmatpush1.msra.mxu0 0.0
        %888 = vmatprep.subr.mxu0 0.0
        %889 = vmatpush1.msra.mxu0 0.0
        %890 = vmatprep.subr.mxu0 0.0
        %891 = vmatpush1.msra.mxu0 0.0
        %892 = vmatprep.subr.mxu0 0.0
        %893 = vmatpush1.msra.mxu0 0.0
        %894 = vmatprep.subr.mxu0 0.0
        %895 = vmatpush1.msra.mxu0 0.0
        %896 = vmatprep.subr.mxu0 0.0
        %897 = vmatpush1.msra.mxu0 0.0
        %898 = vmatprep.subr.mxu0 0.0
        %899 = vmatpush1.msra.mxu0 0.0
        %900 = vmatprep.subr.mxu0 0.0
        %901 = vmatpush1.msra.mxu0 0.0
        %902 = vmatprep.subr.mxu0 0.0
        %903 = vmatpush1.msra.mxu0 0.0
        %904 = vmatprep.subr.mxu0 0.0
        %905 = vmatpush1.msra.mxu0 0.0
        %906 = vmatprep.subr.mxu0 0.0
        %907 = vmatpush1.msra.mxu0 0.0
        %908 = vmatprep.subr.mxu0 0.0
        %909 = vmatpush1.msra.mxu0 0.0
        %910 = vmatprep.subr.mxu0 0.0
        %911 = vmatpush1.msra.mxu0 0.0
        %912 = vmatprep.subr.mxu0 0.0
        %913 = vmatpush1.msra.mxu0 0.0
        %914 = vmatprep.subr.mxu0 0.0
        %915 = vmatpush1.msra.mxu0 0.0
        %916 = vmatprep.subr.mxu0 0.0
        %917 = vmatpush1.msra.mxu0 0.0
        %918 = vmatprep.subr.mxu0 0.0
        %919 = vmatpush1.msra.mxu0 0.0
        %920 = vmatprep.subr.mxu0 0.0
        %921 = vmatpush1.msra.mxu0 0.0
        %922 = vmatprep.subr.mxu0 0.0
        %923 = vmatpush1.msra.mxu0 0.0
        %924 = vmatprep.subr.mxu0 0.0
        %925 = vmatpush1.msra.mxu0 0.0
        %926 = vmatprep.subr.mxu0 0.0
        %927 = vmatpush1.msra.mxu0 0.0
        %928 = vmatprep.subr.mxu0 0.0
        %929 = vmatpush1.msra.mxu0 0.0
        %930 = vmatprep.subr.mxu0 0.0
        %931 = vmatpush1.msra.mxu0 0.0
        %932 = vmatprep.mubr.f32.mxu0 0.0
        %v933 = vand.u32 %v860, 4294901760
        %v934 = vsub.f32 %v860, %v933
        %v935 = vand.u32 %v934, 4294901760
        %v936 = vsub.f32 %v934, %v935
        %v937 = vand.u32 %v936, 4294901760
        %938 = vmatmul.mubr.f32.gmra.mrb[0].mxu0 %v937
        %v939 = vpop.f32.mrb[0].mxu0
        %v940 = vadd.f32 0.0, %v939
        %v941 = vpop.f32.mrb[0].mxu0
        %942 = vmatprep.mubr.f32.mxu0 0.0
        %v943 = vand.u32 %v863, 4294901760
        %v944 = vsub.f32 %v863, %v943
        %v945 = vand.u32 %v944, 4294901760
        %v946 = vsub.f32 %v944, %v945
        %v947 = vand.u32 %v946, 4294901760
        %948 = vmatmul.mubr.f32.gmra.mrb[0].mxu0 %v947
        %v949 = vpop.f32.mrb[0].mxu0
        %v950 = vadd.f32 0.0, %v949
        %v951 = vpop.f32.mrb[0].mxu0
        %952 = vdwg.mxu0
        %953 = vmatprep.subr.mxu0 0.0
        %v954 = vand.u32 %v330, 4294901760
        %v955 = vsub.f32 %v330, %v954
        %v956 = vand.u32 %v955, 4294901760
        %v957 = vsub.f32 %v955, %v956
        %v958 = vand.u32 %v957, 4294901760
        %959 = vmatpush1.msra.mxu0 %v958
        %960 = vmatprep.subr.mxu0 0.0
        %v961 = vand.u32 %v331, 4294901760
        %v962 = vsub.f32 %v331, %v961
        %v963 = vand.u32 %v962, 4294901760
        %v964 = vsub.f32 %v962, %v963
        %v965 = vand.u32 %v964, 4294901760
        %966 = vmatpush1.msra.mxu0 %v965
        %967 = vmatprep.subr.mxu0 0.0
        %v968 = vand.u32 %v342, 4294901760
        %v969 = vsub.f32 %v342, %v968
        %v970 = vand.u32 %v969, 4294901760
        %v971 = vsub.f32 %v969, %v970
        %v972 = vand.u32 %v971, 4294901760
        %973 = vmatpush1.msra.mxu0 %v972
        %974 = vmatprep.subr.mxu0 0.0
        %975 = vmatpush1.msra.mxu0 0.0
        %976 = vmatprep.subr.mxu0 0.0
        %977 = vmatpush1.msra.mxu0 0.0
        %978 = vmatprep.subr.mxu0 0.0
        %979 = vmatpush1.msra.mxu0 0.0
        %980 = vmatprep.subr.mxu0 0.0
        %981 = vmatpush1.msra.mxu0 0.0
        %982 = vmatprep.subr.mxu0 0.0
        %983 = vmatpush1.msra.mxu0 0.0
        %984 = vmatprep.subr.mxu0 0.0
        %985 = vmatpush1.msra.mxu0 0.0
        %986 = vmatprep.subr.mxu0 0.0
        %987 = vmatpush1.msra.mxu0 0.0
        %988 = vmatprep.subr.mxu0 0.0
        %989 = vmatpush1.msra.mxu0 0.0
        %990 = vmatprep.subr.mxu0 0.0
        %991 = vmatpush1.msra.mxu0 0.0
        %992 = vmatprep.subr.mxu0 0.0
        %993 = vmatpush1.msra.mxu0 0.0
        %994 = vmatprep.subr.mxu0 0.0
        %995 = vmatpush1.msra.mxu0 0.0
        %996 = vmatprep.subr.mxu0 0.0
        %997 = vmatpush1.msra.mxu0 0.0
        %998 = vmatprep.subr.mxu0 0.0
        %999 = vmatpush1.msra.mxu0 0.0
        %1000 = vmatprep.subr.mxu0 0.0
        %1001 = vmatpush1.msra.mxu0 0.0
        %1002 = vmatprep.subr.mxu0 0.0
        %1003 = vmatpush1.msra.mxu0 0.0
        %1004 = vmatprep.subr.mxu0 0.0
        %1005 = vmatpush1.msra.mxu0 0.0
        %1006 = vmatprep.subr.mxu0 0.0
        %1007 = vmatpush1.msra.mxu0 0.0
        %1008 = vmatprep.subr.mxu0 0.0
        %1009 = vmatpush1.msra.mxu0 0.0
        %1010 = vmatprep.subr.mxu0 0.0
        %1011 = vmatpush1.msra.mxu0 0.0
        %1012 = vmatprep.subr.mxu0 0.0
        %1013 = vmatpush1.msra.mxu0 0.0
        %1014 = vmatprep.subr.mxu0 0.0
        %1015 = vmatpush1.msra.mxu0 0.0
        %1016 = vmatprep.subr.mxu0 0.0
        %1017 = vmatpush1.msra.mxu0 0.0
        %1018 = vmatprep.subr.mxu0 0.0
        %1019 = vmatpush1.msra.mxu0 0.0
        %1020 = vmatprep.subr.mxu0 0.0
        %1021 = vmatpush1.msra.mxu0 0.0
        %1022 = vmatprep.subr.mxu0 0.0
        %1023 = vmatpush1.msra.mxu0 0.0
        %1024 = vmatprep.subr.mxu0 0.0
        %1025 = vmatpush1.msra.mxu0 0.0
        %1026 = vmatprep.subr.mxu0 0.0
        %1027 = vmatpush1.msra.mxu0 0.0
        %1028 = vmatprep.subr.mxu0 0.0
        %1029 = vmatpush1.msra.mxu0 0.0
        %1030 = vmatprep.subr.mxu0 0.0
        %1031 = vmatpush1.msra.mxu0 0.0
        %1032 = vmatprep.mubr.f32.mxu0 0.0
        %v1033 = vand.u32 %v860, 4294901760
        %1034 = vmatmul.mubr.f32.gmra.mrb[0].mxu0 %v1033
        %v1035 = vpop.f32.mrb[0].mxu0
        %v1036 = vadd.f32 %v940, %v1035
        %v1037 = vpop.f32.mrb[0].mxu0
        %1038 = vmatprep.mubr.f32.mxu0 0.0
        %v1039 = vand.u32 %v863, 4294901760
        %1040 = vmatmul.mubr.f32.gmra.mrb[0].mxu0 %v1039
        %v1041 = vpop.f32.mrb[0].mxu0
        %v1042 = vadd.f32 %v950, %v1041
        %v1043 = vpop.f32.mrb[0].mxu0
        %1044 = vdwg.mxu0
        %1045 = vmatprep.subr.mxu0 0.0
        %v1046 = vand.u32 %v330, 4294901760
        %v1047 = vsub.f32 %v330, %v1046
        %1048 = vmatpush1.msra.mxu0 %v1047
        %1049 = vmatprep.subr.mxu0 0.0
        %v1050 = vand.u32 %v331, 4294901760
        %v1051 = vsub.f32 %v331, %v1050
        %1052 = vmatpush1.msra.mxu0 %v1051
        %1053 = vmatprep.subr.mxu0 0.0
        %v1054 = vand.u32 %v342, 4294901760
        %v1055 = vsub.f32 %v342, %v1054
        %1056 = vmatpush1.msra.mxu0 %v1055
        %1057 = vmatprep.subr.mxu0 0.0
        %1058 = vmatpush1.msra.mxu0 0.0
        %1059 = vmatprep.subr.mxu0 0.0
        %1060 = vmatpush1.msra.mxu0 0.0
        %1061 = vmatprep.subr.mxu0 0.0
        %1062 = vmatpush1.msra.mxu0 0.0
        %1063 = vmatprep.subr.mxu0 0.0
        %1064 = vmatpush1.msra.mxu0 0.0
        %1065 = vmatprep.subr.mxu0 0.0
        %1066 = vmatpush1.msra.mxu0 0.0
        %1067 = vmatprep.subr.mxu0 0.0
        %1068 = vmatpush1.msra.mxu0 0.0
        %1069 = vmatprep.subr.mxu0 0.0
        %1070 = vmatpush1.msra.mxu0 0.0
        %1071 = vmatprep.subr.mxu0 0.0
        %1072 = vmatpush1.msra.mxu0 0.0
        %1073 = vmatprep.subr.mxu0 0.0
        %1074 = vmatpush1.msra.mxu0 0.0
        %1075 = vmatprep.subr.mxu0 0.0
        %1076 = vmatpush1.msra.mxu0 0.0
        %1077 = vmatprep.subr.mxu0 0.0
        %1078 = vmatpush1.msra.mxu0 0.0
        %1079 = vmatprep.subr.mxu0 0.0
        %1080 = vmatpush1.msra.mxu0 0.0
        %1081 = vmatprep.subr.mxu0 0.0
        %1082 = vmatpush1.msra.mxu0 0.0
        %1083 = vmatprep.subr.mxu0 0.0
        %1084 = vmatpush1.msra.mxu0 0.0
        %1085 = vmatprep.subr.mxu0 0.0
        %1086 = vmatpush1.msra.mxu0 0.0
        %1087 = vmatprep.subr.mxu0 0.0
        %1088 = vmatpush1.msra.mxu0 0.0
        %1089 = vmatprep.subr.mxu0 0.0
        %1090 = vmatpush1.msra.mxu0 0.0
        %1091 = vmatprep.subr.mxu0 0.0
        %1092 = vmatpush1.msra.mxu0 0.0
        %1093 = vmatprep.subr.mxu0 0.0
        %1094 = vmatpush1.msra.mxu0 0.0
        %1095 = vmatprep.subr.mxu0 0.0
        %1096 = vmatpush1.msra.mxu0 0.0
        %1097 = vmatprep.subr.mxu0 0.0
        %1098 = vmatpush1.msra.mxu0 0.0
        %1099 = vmatprep.subr.mxu0 0.0
        %1100 = vmatpush1.msra.mxu0 0.0
        %1101 = vmatprep.subr.mxu0 0.0
        %1102 = vmatpush1.msra.mxu0 0.0
        %1103 = vmatprep.subr.mxu0 0.0
        %1104 = vmatpush1.msra.mxu0 0.0
        %1105 = vmatprep.subr.mxu0 0.0
        %1106 = vmatpush1.msra.mxu0 0.0
        %1107 = vmatprep.subr.mxu0 0.0
        %1108 = vmatpush1.msra.mxu0 0.0
        %1109 = vmatprep.subr.mxu0 0.0
        %1110 = vmatpush1.msra.mxu0 0.0
        %1111 = vmatprep.subr.mxu0 0.0
        %1112 = vmatpush1.msra.mxu0 0.0
        %1113 = vmatprep.subr.mxu0 0.0
        %1114 = vmatpush1.msra.mxu0 0.0
        %1115 = vmatprep.mubr.f32.mxu0 0.0
        %v1116 = vand.u32 %v860, 4294901760
        %v1117 = vsub.f32 %v860, %v1116
        %1118 = vmatmul.mubr.f32.gmra.mrb[0].mxu0 %v1117
        %v1119 = vpop.f32.mrb[0].mxu0
        %v1120 = vadd.f32 %v1036, %v1119
        %v1121 = vpop.f32.mrb[0].mxu0
        %1122 = vmatprep.mubr.f32.mxu0 0.0
        %v1123 = vand.u32 %v863, 4294901760
        %v1124 = vsub.f32 %v863, %v1123
        %1125 = vmatmul.mubr.f32.gmra.mrb[0].mxu0 %v1124
        %v1126 = vpop.f32.mrb[0].mxu0
        %v1127 = vadd.f32 %v1042, %v1126
        %v1128 = vpop.f32.mrb[0].mxu0
        %1129 = vdwg.mxu0
        %1130 = vmatprep.subr.mxu0 0.0
        %v1131 = vand.u32 %v330, 4294901760
        %1132 = vmatpush1.msra.mxu0 %v1131
        %1133 = vmatprep.subr.mxu0 0.0
        %v1134 = vand.u32 %v331, 4294901760
        %1135 = vmatpush1.msra.mxu0 %v1134
        %1136 = vmatprep.subr.mxu0 0.0
        %v1137 = vand.u32 %v342, 4294901760
        %1138 = vmatpush1.msra.mxu0 %v1137
        %1139 = vmatprep.subr.mxu0 0.0
        %1140 = vmatpush1.msra.mxu0 0.0
        %1141 = vmatprep.subr.mxu0 0.0
        %1142 = vmatpush1.msra.mxu0 0.0
        %1143 = vmatprep.subr.mxu0 0.0
        %1144 = vmatpush1.msra.mxu0 0.0
        %1145 = vmatprep.subr.mxu0 0.0
        %1146 = vmatpush1.msra.mxu0 0.0
        %1147 = vmatprep.subr.mxu0 0.0
        %1148 = vmatpush1.msra.mxu0 0.0
        %1149 = vmatprep.subr.mxu0 0.0
        %1150 = vmatpush1.msra.mxu0 0.0
        %1151 = vmatprep.subr.mxu0 0.0
        %1152 = vmatpush1.msra.mxu0 0.0
        %1153 = vmatprep.subr.mxu0 0.0
        %1154 = vmatpush1.msra.mxu0 0.0
        %1155 = vmatprep.subr.mxu0 0.0
        %1156 = vmatpush1.msra.mxu0 0.0
        %1157 = vmatprep.subr.mxu0 0.0
        %1158 = vmatpush1.msra.mxu0 0.0
        %1159 = vmatprep.subr.mxu0 0.0
        %1160 = vmatpush1.msra.mxu0 0.0
        %1161 = vmatprep.subr.mxu0 0.0
        %1162 = vmatpush1.msra.mxu0 0.0
        %1163 = vmatprep.subr.mxu0 0.0
        %1164 = vmatpush1.msra.mxu0 0.0
        %1165 = vmatprep.subr.mxu0 0.0
        %1166 = vmatpush1.msra.mxu0 0.0
        %1167 = vmatprep.subr.mxu0 0.0
        %1168 = vmatpush1.msra.mxu0 0.0
        %1169 = vmatprep.subr.mxu0 0.0
        %1170 = vmatpush1.msra.mxu0 0.0
        %1171 = vmatprep.subr.mxu0 0.0
        %1172 = vmatpush1.msra.mxu0 0.0
        %1173 = vmatprep.subr.mxu0 0.0
        %1174 = vmatpush1.msra.mxu0 0.0
        %1175 = vmatprep.subr.mxu0 0.0
        %1176 = vmatpush1.msra.mxu0 0.0
        %1177 = vmatprep.subr.mxu0 0.0
        %1178 = vmatpush1.msra.mxu0 0.0
        %1179 = vmatprep.subr.mxu0 0.0
        %1180 = vmatpush1.msra.mxu0 0.0
        %1181 = vmatprep.subr.mxu0 0.0
        %1182 = vmatpush1.msra.mxu0 0.0
        %1183 = vmatprep.subr.mxu0 0.0
        %1184 = vmatpush1.msra.mxu0 0.0
        %1185 = vmatprep.subr.mxu0 0.0
        %1186 = vmatpush1.msra.mxu0 0.0
        %1187 = vmatprep.subr.mxu0 0.0
        %1188 = vmatpush1.msra.mxu0 0.0
        %1189 = vmatprep.subr.mxu0 0.0
        %1190 = vmatpush1.msra.mxu0 0.0
        %1191 = vmatprep.subr.mxu0 0.0
        %1192 = vmatpush1.msra.mxu0 0.0
        %1193 = vmatprep.subr.mxu0 0.0
        %1194 = vmatpush1.msra.mxu0 0.0
        %1195 = vmatprep.subr.mxu0 0.0
        %1196 = vmatpush1.msra.mxu0 0.0
        %1197 = vmatprep.mubr.f32.mxu0 0.0
        %v1198 = vand.u32 %v860, 4294901760
        %v1199 = vsub.f32 %v860, %v1198
        %v1200 = vand.u32 %v1199, 4294901760
        %1201 = vmatmul.mubr.f32.gmra.mrb[0].mxu0 %v1200
        %v1202 = vpop.f32.mrb[0].mxu0
        %v1203 = vadd.f32 %v1120, %v1202
        %v1204 = vpop.f32.mrb[0].mxu0
        %1205 = vmatprep.mubr.f32.mxu0 0.0
        %v1206 = vand.u32 %v863, 4294901760
        %v1207 = vsub.f32 %v863, %v1206
        %v1208 = vand.u32 %v1207, 4294901760
        %1209 = vmatmul.mubr.f32.gmra.mrb[0].mxu0 %v1208
        %v1210 = vpop.f32.mrb[0].mxu0
        %v1211 = vadd.f32 %v1127, %v1210
        %v1212 = vpop.f32.mrb[0].mxu0
        %1213 = vdwg.mxu0
        %1214 = vmatprep.subr.mxu0 0.0
        %v1215 = vand.u32 %v330, 4294901760
        %v1216 = vsub.f32 %v330, %v1215
        %v1217 = vand.u32 %v1216, 4294901760
        %1218 = vmatpush1.msra.mxu0 %v1217
        %1219 = vmatprep.subr.mxu0 0.0
        %v1220 = vand.u32 %v331, 4294901760
        %v1221 = vsub.f32 %v331, %v1220
        %v1222 = vand.u32 %v1221, 4294901760
        %1223 = vmatpush1.msra.mxu0 %v1222
        %1224 = vmatprep.subr.mxu0 0.0
        %v1225 = vand.u32 %v342, 4294901760
        %v1226 = vsub.f32 %v342, %v1225
        %v1227 = vand.u32 %v1226, 4294901760
        %1228 = vmatpush1.msra.mxu0 %v1227
        %1229 = vmatprep.subr.mxu0 0.0
        %1230 = vmatpush1.msra.mxu0 0.0
        %1231 = vmatprep.subr.mxu0 0.0
        %1232 = vmatpush1.msra.mxu0 0.0
        %1233 = vmatprep.subr.mxu0 0.0
        %1234 = vmatpush1.msra.mxu0 0.0
        %1235 = vmatprep.subr.mxu0 0.0
        %1236 = vmatpush1.msra.mxu0 0.0
        %1237 = vmatprep.subr.mxu0 0.0
        %1238 = vmatpush1.msra.mxu0 0.0
        %1239 = vmatprep.subr.mxu0 0.0
        %1240 = vmatpush1.msra.mxu0 0.0
        %1241 = vmatprep.subr.mxu0 0.0
        %1242 = vmatpush1.msra.mxu0 0.0
        %1243 = vmatprep.subr.mxu0 0.0
        %1244 = vmatpush1.msra.mxu0 0.0
        %1245 = vmatprep.subr.mxu0 0.0
        %1246 = vmatpush1.msra.mxu0 0.0
        %1247 = vmatprep.subr.mxu0 0.0
        %1248 = vmatpush1.msra.mxu0 0.0
        %1249 = vmatprep.subr.mxu0 0.0
        %1250 = vmatpush1.msra.mxu0 0.0
        %1251 = vmatprep.subr.mxu0 0.0
        %1252 = vmatpush1.msra.mxu0 0.0
        %1253 = vmatprep.subr.mxu0 0.0
        %1254 = vmatpush1.msra.mxu0 0.0
        %1255 = vmatprep.subr.mxu0 0.0
        %1256 = vmatpush1.msra.mxu0 0.0
        %1257 = vmatprep.subr.mxu0 0.0
        %1258 = vmatpush1.msra.mxu0 0.0
        %1259 = vmatprep.subr.mxu0 0.0
        %1260 = vmatpush1.msra.mxu0 0.0
        %1261 = vmatprep.subr.mxu0 0.0
        %1262 = vmatpush1.msra.mxu0 0.0
        %1263 = vmatprep.subr.mxu0 0.0
        %1264 = vmatpush1.msra.mxu0 0.0
        %1265 = vmatprep.subr.mxu0 0.0
        %1266 = vmatpush1.msra.mxu0 0.0
        %1267 = vmatprep.subr.mxu0 0.0
        %1268 = vmatpush1.msra.mxu0 0.0
        %1269 = vmatprep.subr.mxu0 0.0
        %1270 = vmatpush1.msra.mxu0 0.0
        %1271 = vmatprep.subr.mxu0 0.0
        %1272 = vmatpush1.msra.mxu0 0.0
        %1273 = vmatprep.subr.mxu0 0.0
        %1274 = vmatpush1.msra.mxu0 0.0
        %1275 = vmatprep.subr.mxu0 0.0
        %1276 = vmatpush1.msra.mxu0 0.0
        %1277 = vmatprep.subr.mxu0 0.0
        %1278 = vmatpush1.msra.mxu0 0.0
        %1279 = vmatprep.subr.mxu0 0.0
        %1280 = vmatpush1.msra.mxu0 0.0
        %1281 = vmatprep.subr.mxu0 0.0
        %1282 = vmatpush1.msra.mxu0 0.0
        %1283 = vmatprep.subr.mxu0 0.0
        %1284 = vmatpush1.msra.mxu0 0.0
        %1285 = vmatprep.subr.mxu0 0.0
        %1286 = vmatpush1.msra.mxu0 0.0
        %1287 = vmatprep.mubr.f32.mxu0 0.0
        %v1288 = vand.u32 %v860, 4294901760
        %1289 = vmatmul.mubr.f32.gmra.mrb[0].mxu0 %v1288
        %v1290 = vpop.f32.mrb[0].mxu0
        %v1291 = vadd.f32 %v1203, %v1290
        %v1292 = vpop.f32.mrb[0].mxu0
        %1293 = vmatprep.mubr.f32.mxu0 0.0
        %v1294 = vand.u32 %v863, 4294901760
        %1295 = vmatmul.mubr.f32.gmra.mrb[0].mxu0 %v1294
        %v1296 = vpop.f32.mrb[0].mxu0
        %v1297 = vadd.f32 %v1211, %v1296
        %v1298 = vpop.f32.mrb[0].mxu0
        %1299 = vdwg.mxu0
        %1300 = vmatprep.subr.mxu0 0.0
        %v1301 = vand.u32 %v330, 4294901760
        %1302 = vmatpush1.msra.mxu0 %v1301
        %1303 = vmatprep.subr.mxu0 0.0
        %v1304 = vand.u32 %v331, 4294901760
        %1305 = vmatpush1.msra.mxu0 %v1304
        %1306 = vmatprep.subr.mxu0 0.0
        %v1307 = vand.u32 %v342, 4294901760
        %1308 = vmatpush1.msra.mxu0 %v1307
        %1309 = vmatprep.subr.mxu0 0.0
        %1310 = vmatpush1.msra.mxu0 0.0
        %1311 = vmatprep.subr.mxu0 0.0
        %1312 = vmatpush1.msra.mxu0 0.0
        %1313 = vmatprep.subr.mxu0 0.0
        %1314 = vmatpush1.msra.mxu0 0.0
        %1315 = vmatprep.subr.mxu0 0.0
        %1316 = vmatpush1.msra.mxu0 0.0
        %1317 = vmatprep.subr.mxu0 0.0
        %1318 = vmatpush1.msra.mxu0 0.0
        %1319 = vmatprep.subr.mxu0 0.0
        %1320 = vmatpush1.msra.mxu0 0.0
        %1321 = vmatprep.subr.mxu0 0.0
        %1322 = vmatpush1.msra.mxu0 0.0
        %1323 = vmatprep.subr.mxu0 0.0
        %1324 = vmatpush1.msra.mxu0 0.0
        %1325 = vmatprep.subr.mxu0 0.0
        %1326 = vmatpush1.msra.mxu0 0.0
        %1327 = vmatprep.subr.mxu0 0.0
        %1328 = vmatpush1.msra.mxu0 0.0
        %1329 = vmatprep.subr.mxu0 0.0
        %1330 = vmatpush1.msra.mxu0 0.0
        %1331 = vmatprep.subr.mxu0 0.0
        %1332 = vmatpush1.msra.mxu0 0.0
        %1333 = vmatprep.subr.mxu0 0.0
        %1334 = vmatpush1.msra.mxu0 0.0
        %1335 = vmatprep.subr.mxu0 0.0
        %1336 = vmatpush1.msra.mxu0 0.0
        %1337 = vmatprep.subr.mxu0 0.0
        %1338 = vmatpush1.msra.mxu0 0.0
        %1339 = vmatprep.subr.mxu0 0.0
        %1340 = vmatpush1.msra.mxu0 0.0
        %1341 = vmatprep.subr.mxu0 0.0
        %1342 = vmatpush1.msra.mxu0 0.0
        %1343 = vmatprep.subr.mxu0 0.0
        %1344 = vmatpush1.msra.mxu0 0.0
        %1345 = vmatprep.subr.mxu0 0.0
        %1346 = vmatpush1.msra.mxu0 0.0
        %1347 = vmatprep.subr.mxu0 0.0
        %1348 = vmatpush1.msra.mxu0 0.0
        %1349 = vmatprep.subr.mxu0 0.0
        %1350 = vmatpush1.msra.mxu0 0.0
        %1351 = vmatprep.subr.mxu0 0.0
        %1352 = vmatpush1.msra.mxu0 0.0
        %1353 = vmatprep.subr.mxu0 0.0
        %1354 = vmatpush1.msra.mxu0 0.0
        %1355 = vmatprep.subr.mxu0 0.0
        %1356 = vmatpush1.msra.mxu0 0.0
        %1357 = vmatprep.subr.mxu0 0.0
        %1358 = vmatpush1.msra.mxu0 0.0
        %1359 = vmatprep.subr.mxu0 0.0
        %1360 = vmatpush1.msra.mxu0 0.0
        %1361 = vmatprep.subr.mxu0 0.0
        %1362 = vmatpush1.msra.mxu0 0.0
        %1363 = vmatprep.subr.mxu0 0.0
        %1364 = vmatpush1.msra.mxu0 0.0
        %1365 = vmatprep.subr.mxu0 0.0
        %1366 = vmatpush1.msra.mxu0 0.0
        %1367 = vmatprep.mubr.f32.mxu0 0.0
        %v1368 = vand.u32 %v860, 4294901760
        %1369 = vmatmul.mubr.f32.gmra.mrb[0].mxu0 %v1368
        %v1370 = vpop.f32.mrb[0].mxu0
        %v1371 = vadd.f32 %v1291, %v1370
        %v1372 = vpop.f32.mrb[0].mxu0
        %1373 = vmatprep.mubr.f32.mxu0 0.0
        %v1374 = vand.u32 %v863, 4294901760
        %1375 = vmatmul.mubr.f32.gmra.mrb[0].mxu0 %v1374
        %v1376 = vpop.f32.mrb[0].mxu0
        %v1377 = vadd.f32 %v1297, %v1376
        %v1378 = vpop.f32.mrb[0].mxu0
        %1379 = vdwg.mxu0
        %v1381 = vsel %vm333, %v313, 0
        %v1384 = vsel %vm333, %v314, 0
        %1386 = vmatprep.subr.mxu0 0.0
        %v1387 = vand.u32 %v330, 4294901760
        %1388 = vmatpush1.msra.mxu0 %v1387
        %1389 = vmatprep.subr.mxu0 0.0
        %v1390 = vand.u32 %v331, 4294901760
        %1391 = vmatpush1.msra.mxu0 %v1390
        %1392 = vmatprep.subr.mxu0 0.0
        %v1393 = vand.u32 %v342, 4294901760
        %1394 = vmatpush1.msra.mxu0 %v1393
        %1395 = vmatprep.subr.mxu0 0.0
        %1396 = vmatpush1.msra.mxu0 0.0
        %1397 = vmatprep.subr.mxu0 0.0
        %1398 = vmatpush1.msra.mxu0 0.0
        %1399 = vmatprep.subr.mxu0 0.0
        %1400 = vmatpush1.msra.mxu0 0.0
        %1401 = vmatprep.subr.mxu0 0.0
        %1402 = vmatpush1.msra.mxu0 0.0
        %1403 = vmatprep.subr.mxu0 0.0
        %1404 = vmatpush1.msra.mxu0 0.0
        %1405 = vmatprep.subr.mxu0 0.0
        %1406 = vmatpush1.msra.mxu0 0.0
        %1407 = vmatprep.subr.mxu0 0.0
        %1408 = vmatpush1.msra.mxu0 0.0
        %1409 = vmatprep.subr.mxu0 0.0
        %1410 = vmatpush1.msra.mxu0 0.0
        %1411 = vmatprep.subr.mxu0 0.0
        %1412 = vmatpush1.msra.mxu0 0.0
        %1413 = vmatprep.subr.mxu0 0.0
        %1414 = vmatpush1.msra.mxu0 0.0
        %1415 = vmatprep.subr.mxu0 0.0
        %1416 = vmatpush1.msra.mxu0 0.0
        %1417 = vmatprep.subr.mxu0 0.0
        %1418 = vmatpush1.msra.mxu0 0.0
        %1419 = vmatprep.subr.mxu0 0.0
        %1420 = vmatpush1.msra.mxu0 0.0
        %1421 = vmatprep.subr.mxu0 0.0
        %1422 = vmatpush1.msra.mxu0 0.0
        %1423 = vmatprep.subr.mxu0 0.0
        %1424 = vmatpush1.msra.mxu0 0.0
        %1425 = vmatprep.subr.mxu0 0.0
        %1426 = vmatpush1.msra.mxu0 0.0
        %1427 = vmatprep.subr.mxu0 0.0
        %1428 = vmatpush1.msra.mxu0 0.0
        %1429 = vmatprep.subr.mxu0 0.0
        %1430 = vmatpush1.msra.mxu0 0.0
        %1431 = vmatprep.subr.mxu0 0.0
        %1432 = vmatpush1.msra.mxu0 0.0
        %1433 = vmatprep.subr.mxu0 0.0
        %1434 = vmatpush1.msra.mxu0 0.0
        %1435 = vmatprep.subr.mxu0 0.0
        %1436 = vmatpush1.msra.mxu0 0.0
        %1437 = vmatprep.subr.mxu0 0.0
        %1438 = vmatpush1.msra.mxu0 0.0
        %1439 = vmatprep.subr.mxu0 0.0
        %1440 = vmatpush1.msra.mxu0 0.0
        %1441 = vmatprep.subr.mxu0 0.0
        %1442 = vmatpush1.msra.mxu0 0.0
        %1443 = vmatprep.subr.mxu0 0.0
        %1444 = vmatpush1.msra.mxu0 0.0
        %1445 = vmatprep.subr.mxu0 0.0
        %1446 = vmatpush1.msra.mxu0 0.0
        %1447 = vmatprep.subr.mxu0 0.0
        %1448 = vmatpush1.msra.mxu0 0.0
        %1449 = vmatprep.subr.mxu0 0.0
        %1450 = vmatpush1.msra.mxu0 0.0
        %1451 = vmatprep.subr.mxu0 0.0
        %1452 = vmatpush1.msra.mxu0 0.0
        %1453 = vmatprep.mubr.f32.mxu0 0.0
        %v1454 = vand.u32 %v1381, 4294901760
        %v1455 = vsub.f32 %v1381, %v1454
        %v1456 = vand.u32 %v1455, 4294901760
        %v1457 = vsub.f32 %v1455, %v1456
        %v1458 = vand.u32 %v1457, 4294901760
        %1459 = vmatmul.mubr.f32.gmra.mrb[0].mxu0 %v1458
        %v1460 = vpop.f32.mrb[0].mxu0
        %v1461 = vadd.f32 0.0, %v1460
        %v1462 = vpop.f32.mrb[0].mxu0
        %1463 = vmatprep.mubr.f32.mxu0 0.0
        %v1464 = vand.u32 %v1384, 4294901760
        %v1465 = vsub.f32 %v1384, %v1464
        %v1466 = vand.u32 %v1465, 4294901760
        %v1467 = vsub.f32 %v1465, %v1466
        %v1468 = vand.u32 %v1467, 4294901760
        %1469 = vmatmul.mubr.f32.gmra.mrb[0].mxu0 %v1468
        %v1470 = vpop.f32.mrb[0].mxu0
        %v1471 = vadd.f32 0.0, %v1470
        %v1472 = vpop.f32.mrb[0].mxu0
        %1473 = vdwg.mxu0
        %1474 = vmatprep.subr.mxu0 0.0
        %v1475 = vand.u32 %v330, 4294901760
        %v1476 = vsub.f32 %v330, %v1475
        %v1477 = vand.u32 %v1476, 4294901760
        %v1478 = vsub.f32 %v1476, %v1477
        %v1479 = vand.u32 %v1478, 4294901760
        %1480 = vmatpush1.msra.mxu0 %v1479
        %1481 = vmatprep.subr.mxu0 0.0
        %v1482 = vand.u32 %v331, 4294901760
        %v1483 = vsub.f32 %v331, %v1482
        %v1484 = vand.u32 %v1483, 4294901760
        %v1485 = vsub.f32 %v1483, %v1484
        %v1486 = vand.u32 %v1485, 4294901760
        %1487 = vmatpush1.msra.mxu0 %v1486
        %1488 = vmatprep.subr.mxu0 0.0
        %v1489 = vand.u32 %v342, 4294901760
        %v1490 = vsub.f32 %v342, %v1489
        %v1491 = vand.u32 %v1490, 4294901760
        %v1492 = vsub.f32 %v1490, %v1491
        %v1493 = vand.u32 %v1492, 4294901760
        %1494 = vmatpush1.msra.mxu0 %v1493
        %1495 = vmatprep.subr.mxu0 0.0
        %1496 = vmatpush1.msra.mxu0 0.0
        %1497 = vmatprep.subr.mxu0 0.0
        %1498 = vmatpush1.msra.mxu0 0.0
        %1499 = vmatprep.subr.mxu0 0.0
        %1500 = vmatpush1.msra.mxu0 0.0
        %1501 = vmatprep.subr.mxu0 0.0
        %1502 = vmatpush1.msra.mxu0 0.0
        %1503 = vmatprep.subr.mxu0 0.0
        %1504 = vmatpush1.msra.mxu0 0.0
        %1505 = vmatprep.subr.mxu0 0.0
        %1506 = vmatpush1.msra.mxu0 0.0
        %1507 = vmatprep.subr.mxu0 0.0
        %1508 = vmatpush1.msra.mxu0 0.0
        %1509 = vmatprep.subr.mxu0 0.0
        %1510 = vmatpush1.msra.mxu0 0.0
        %1511 = vmatprep.subr.mxu0 0.0
        %1512 = vmatpush1.msra.mxu0 0.0
        %1513 = vmatprep.subr.mxu0 0.0
        %1514 = vmatpush1.msra.mxu0 0.0
        %1515 = vmatprep.subr.mxu0 0.0
        %1516 = vmatpush1.msra.mxu0 0.0
        %1517 = vmatprep.subr.mxu0 0.0
        %1518 = vmatpush1.msra.mxu0 0.0
        %1519 = vmatprep.subr.mxu0 0.0
        %1520 = vmatpush1.msra.mxu0 0.0
        %1521 = vmatprep.subr.mxu0 0.0
        %1522 = vmatpush1.msra.mxu0 0.0
        %1523 = vmatprep.subr.mxu0 0.0
        %1524 = vmatpush1.msra.mxu0 0.0
        %1525 = vmatprep.subr.mxu0 0.0
        %1526 = vmatpush1.msra.mxu0 0.0
        %1527 = vmatprep.subr.mxu0 0.0
        %1528 = vmatpush1.msra.mxu0 0.0
        %1529 = vmatprep.subr.mxu0 0.0
        %1530 = vmatpush1.msra.mxu0 0.0
        %1531 = vmatprep.subr.mxu0 0.0
        %1532 = vmatpush1.msra.mxu0 0.0
        %1533 = vmatprep.subr.mxu0 0.0
        %1534 = vmatpush1.msra.mxu0 0.0
        %1535 = vmatprep.subr.mxu0 0.0
        %1536 = vmatpush1.msra.mxu0 0.0
        %1537 = vmatprep.subr.mxu0 0.0
        %1538 = vmatpush1.msra.mxu0 0.0
        %1539 = vmatprep.subr.mxu0 0.0
        %1540 = vmatpush1.msra.mxu0 0.0
        %1541 = vmatprep.subr.mxu0 0.0
        %1542 = vmatpush1.msra.mxu0 0.0
        %1543 = vmatprep.subr.mxu0 0.0
        %1544 = vmatpush1.msra.mxu0 0.0
        %1545 = vmatprep.subr.mxu0 0.0
        %1546 = vmatpush1.msra.mxu0 0.0
        %1547 = vmatprep.subr.mxu0 0.0
        %1548 = vmatpush1.msra.mxu0 0.0
        %1549 = vmatprep.subr.mxu0 0.0
        %1550 = vmatpush1.msra.mxu0 0.0
        %1551 = vmatprep.subr.mxu0 0.0
        %1552 = vmatpush1.msra.mxu0 0.0
        %1553 = vmatprep.mubr.f32.mxu0 0.0
        %v1554 = vand.u32 %v1381, 4294901760
        %1555 = vmatmul.mubr.f32.gmra.mrb[0].mxu0 %v1554
        %v1556 = vpop.f32.mrb[0].mxu0
        %v1557 = vadd.f32 %v1461, %v1556
        %v1558 = vpop.f32.mrb[0].mxu0
        %1559 = vmatprep.mubr.f32.mxu0 0.0
        %v1560 = vand.u32 %v1384, 4294901760
        %1561 = vmatmul.mubr.f32.gmra.mrb[0].mxu0 %v1560
        %v1562 = vpop.f32.mrb[0].mxu0
        %v1563 = vadd.f32 %v1471, %v1562
        %v1564 = vpop.f32.mrb[0].mxu0
        %1565 = vdwg.mxu0
        %1566 = vmatprep.subr.mxu0 0.0
        %v1567 = vand.u32 %v330, 4294901760
        %v1568 = vsub.f32 %v330, %v1567
        %1569 = vmatpush1.msra.mxu0 %v1568
        %1570 = vmatprep.subr.mxu0 0.0
        %v1571 = vand.u32 %v331, 4294901760
        %v1572 = vsub.f32 %v331, %v1571
        %1573 = vmatpush1.msra.mxu0 %v1572
        %1574 = vmatprep.subr.mxu0 0.0
        %v1575 = vand.u32 %v342, 4294901760
        %v1576 = vsub.f32 %v342, %v1575
        %1577 = vmatpush1.msra.mxu0 %v1576
        %1578 = vmatprep.subr.mxu0 0.0
        %1579 = vmatpush1.msra.mxu0 0.0
        %1580 = vmatprep.subr.mxu0 0.0
        %1581 = vmatpush1.msra.mxu0 0.0
        %1582 = vmatprep.subr.mxu0 0.0
        %1583 = vmatpush1.msra.mxu0 0.0
        %1584 = vmatprep.subr.mxu0 0.0
        %1585 = vmatpush1.msra.mxu0 0.0
        %1586 = vmatprep.subr.mxu0 0.0
        %1587 = vmatpush1.msra.mxu0 0.0
        %1588 = vmatprep.subr.mxu0 0.0
        %1589 = vmatpush1.msra.mxu0 0.0
        %1590 = vmatprep.subr.mxu0 0.0
        %1591 = vmatpush1.msra.mxu0 0.0
        %1592 = vmatprep.subr.mxu0 0.0
        %1593 = vmatpush1.msra.mxu0 0.0
        %1594 = vmatprep.subr.mxu0 0.0
        %1595 = vmatpush1.msra.mxu0 0.0
        %1596 = vmatprep.subr.mxu0 0.0
        %1597 = vmatpush1.msra.mxu0 0.0
        %1598 = vmatprep.subr.mxu0 0.0
        %1599 = vmatpush1.msra.mxu0 0.0
        %1600 = vmatprep.subr.mxu0 0.0
        %1601 = vmatpush1.msra.mxu0 0.0
        %1602 = vmatprep.subr.mxu0 0.0
        %1603 = vmatpush1.msra.mxu0 0.0
        %1604 = vmatprep.subr.mxu0 0.0
        %1605 = vmatpush1.msra.mxu0 0.0
        %1606 = vmatprep.subr.mxu0 0.0
        %1607 = vmatpush1.msra.mxu0 0.0
        %1608 = vmatprep.subr.mxu0 0.0
        %1609 = vmatpush1.msra.mxu0 0.0
        %1610 = vmatprep.subr.mxu0 0.0
        %1611 = vmatpush1.msra.mxu0 0.0
        %1612 = vmatprep.subr.mxu0 0.0
        %1613 = vmatpush1.msra.mxu0 0.0
        %1614 = vmatprep.subr.mxu0 0.0
        %1615 = vmatpush1.msra.mxu0 0.0
        %1616 = vmatprep.subr.mxu0 0.0
        %1617 = vmatpush1.msra.mxu0 0.0
        %1618 = vmatprep.subr.mxu0 0.0
        %1619 = vmatpush1.msra.mxu0 0.0
        %1620 = vmatprep.subr.mxu0 0.0
        %1621 = vmatpush1.msra.mxu0 0.0
        %1622 = vmatprep.subr.mxu0 0.0
        %1623 = vmatpush1.msra.mxu0 0.0
        %1624 = vmatprep.subr.mxu0 0.0
        %1625 = vmatpush1.msra.mxu0 0.0
        %1626 = vmatprep.subr.mxu0 0.0
        %1627 = vmatpush1.msra.mxu0 0.0
        %1628 = vmatprep.subr.mxu0 0.0
        %1629 = vmatpush1.msra.mxu0 0.0
        %1630 = vmatprep.subr.mxu0 0.0
        %1631 = vmatpush1.msra.mxu0 0.0
        %1632 = vmatprep.subr.mxu0 0.0
        %1633 = vmatpush1.msra.mxu0 0.0
        %1634 = vmatprep.subr.mxu0 0.0
        %1635 = vmatpush1.msra.mxu0 0.0
        %1636 = vmatprep.mubr.f32.mxu0 0.0
        %v1637 = vand.u32 %v1381, 4294901760
        %v1638 = vsub.f32 %v1381, %v1637
        %1639 = vmatmul.mubr.f32.gmra.mrb[0].mxu0 %v1638
        %v1640 = vpop.f32.mrb[0].mxu0
        %v1641 = vadd.f32 %v1557, %v1640
        %v1642 = vpop.f32.mrb[0].mxu0
        %1643 = vmatprep.mubr.f32.mxu0 0.0
        %v1644 = vand.u32 %v1384, 4294901760
        %v1645 = vsub.f32 %v1384, %v1644
        %1646 = vmatmul.mubr.f32.gmra.mrb[0].mxu0 %v1645
        %v1647 = vpop.f32.mrb[0].mxu0
        %v1648 = vadd.f32 %v1563, %v1647
        %v1649 = vpop.f32.mrb[0].mxu0
        %1650 = vdwg.mxu0
        %1651 = vmatprep.subr.mxu0 0.0
        %v1652 = vand.u32 %v330, 4294901760
        %1653 = vmatpush1.msra.mxu0 %v1652
        %1654 = vmatprep.subr.mxu0 0.0
        %v1655 = vand.u32 %v331, 4294901760
        %1656 = vmatpush1.msra.mxu0 %v1655
        %1657 = vmatprep.subr.mxu0 0.0
        %v1658 = vand.u32 %v342, 4294901760
        %1659 = vmatpush1.msra.mxu0 %v1658
        %1660 = vmatprep.subr.mxu0 0.0
        %1661 = vmatpush1.msra.mxu0 0.0
        %1662 = vmatprep.subr.mxu0 0.0
        %1663 = vmatpush1.msra.mxu0 0.0
        %1664 = vmatprep.subr.mxu0 0.0
        %1665 = vmatpush1.msra.mxu0 0.0
        %1666 = vmatprep.subr.mxu0 0.0
        %1667 = vmatpush1.msra.mxu0 0.0
        %1668 = vmatprep.subr.mxu0 0.0
        %1669 = vmatpush1.msra.mxu0 0.0
        %1670 = vmatprep.subr.mxu0 0.0
        %1671 = vmatpush1.msra.mxu0 0.0
        %1672 = vmatprep.subr.mxu0 0.0
        %1673 = vmatpush1.msra.mxu0 0.0
        %1674 = vmatprep.subr.mxu0 0.0
        %1675 = vmatpush1.msra.mxu0 0.0
        %1676 = vmatprep.subr.mxu0 0.0
        %1677 = vmatpush1.msra.mxu0 0.0
        %1678 = vmatprep.subr.mxu0 0.0
        %1679 = vmatpush1.msra.mxu0 0.0
        %1680 = vmatprep.subr.mxu0 0.0
        %1681 = vmatpush1.msra.mxu0 0.0
        %1682 = vmatprep.subr.mxu0 0.0
        %1683 = vmatpush1.msra.mxu0 0.0
        %1684 = vmatprep.subr.mxu0 0.0
        %1685 = vmatpush1.msra.mxu0 0.0
        %1686 = vmatprep.subr.mxu0 0.0
        %1687 = vmatpush1.msra.mxu0 0.0
        %1688 = vmatprep.subr.mxu0 0.0
        %1689 = vmatpush1.msra.mxu0 0.0
        %1690 = vmatprep.subr.mxu0 0.0
        %1691 = vmatpush1.msra.mxu0 0.0
        %1692 = vmatprep.subr.mxu0 0.0
        %1693 = vmatpush1.msra.mxu0 0.0
        %1694 = vmatprep.subr.mxu0 0.0
        %1695 = vmatpush1.msra.mxu0 0.0
        %1696 = vmatprep.subr.mxu0 0.0
        %1697 = vmatpush1.msra.mxu0 0.0
        %1698 = vmatprep.subr.mxu0 0.0
        %1699 = vmatpush1.msra.mxu0 0.0
        %1700 = vmatprep.subr.mxu0 0.0
        %1701 = vmatpush1.msra.mxu0 0.0
        %1702 = vmatprep.subr.mxu0 0.0
        %1703 = vmatpush1.msra.mxu0 0.0
        %1704 = vmatprep.subr.mxu0 0.0
        %1705 = vmatpush1.msra.mxu0 0.0
        %1706 = vmatprep.subr.mxu0 0.0
        %1707 = vmatpush1.msra.mxu0 0.0
        %1708 = vmatprep.subr.mxu0 0.0
        %1709 = vmatpush1.msra.mxu0 0.0
        %1710 = vmatprep.subr.mxu0 0.0
        %1711 = vmatpush1.msra.mxu0 0.0
        %1712 = vmatprep.subr.mxu0 0.0
        %1713 = vmatpush1.msra.mxu0 0.0
        %1714 = vmatprep.subr.mxu0 0.0
        %1715 = vmatpush1.msra.mxu0 0.0
        %1716 = vmatprep.subr.mxu0 0.0
        %1717 = vmatpush1.msra.mxu0 0.0
        %1718 = vmatprep.mubr.f32.mxu0 0.0
        %v1719 = vand.u32 %v1381, 4294901760
        %v1720 = vsub.f32 %v1381, %v1719
        %v1721 = vand.u32 %v1720, 4294901760
        %1722 = vmatmul.mubr.f32.gmra.mrb[0].mxu0 %v1721
        %v1723 = vpop.f32.mrb[0].mxu0
        %v1724 = vadd.f32 %v1641, %v1723
        %v1725 = vpop.f32.mrb[0].mxu0
        %1726 = vmatprep.mubr.f32.mxu0 0.0
        %v1727 = vand.u32 %v1384, 4294901760
        %v1728 = vsub.f32 %v1384, %v1727
        %v1729 = vand.u32 %v1728, 4294901760
        %1730 = vmatmul.mubr.f32.gmra.mrb[0].mxu0 %v1729
        %v1731 = vpop.f32.mrb[0].mxu0
        %v1732 = vadd.f32 %v1648, %v1731
        %v1733 = vpop.f32.mrb[0].mxu0
        %1734 = vdwg.mxu0
        %1735 = vmatprep.subr.mxu0 0.0
        %v1736 = vand.u32 %v330, 4294901760
        %v1737 = vsub.f32 %v330, %v1736
        %v1738 = vand.u32 %v1737, 4294901760
        %1739 = vmatpush1.msra.mxu0 %v1738
        %1740 = vmatprep.subr.mxu0 0.0
        %v1741 = vand.u32 %v331, 4294901760
        %v1742 = vsub.f32 %v331, %v1741
        %v1743 = vand.u32 %v1742, 4294901760
        %1744 = vmatpush1.msra.mxu0 %v1743
        %1745 = vmatprep.subr.mxu0 0.0
        %v1746 = vand.u32 %v342, 4294901760
        %v1747 = vsub.f32 %v342, %v1746
        %v1748 = vand.u32 %v1747, 4294901760
        %1749 = vmatpush1.msra.mxu0 %v1748
        %1750 = vmatprep.subr.mxu0 0.0
        %1751 = vmatpush1.msra.mxu0 0.0
        %1752 = vmatprep.subr.mxu0 0.0
        %1753 = vmatpush1.msra.mxu0 0.0
        %1754 = vmatprep.subr.mxu0 0.0
        %1755 = vmatpush1.msra.mxu0 0.0
        %1756 = vmatprep.subr.mxu0 0.0
        %1757 = vmatpush1.msra.mxu0 0.0
        %1758 = vmatprep.subr.mxu0 0.0
        %1759 = vmatpush1.msra.mxu0 0.0
        %1760 = vmatprep.subr.mxu0 0.0
        %1761 = vmatpush1.msra.mxu0 0.0
        %1762 = vmatprep.subr.mxu0 0.0
        %1763 = vmatpush1.msra.mxu0 0.0
        %1764 = vmatprep.subr.mxu0 0.0
        %1765 = vmatpush1.msra.mxu0 0.0
        %1766 = vmatprep.subr.mxu0 0.0
        %1767 = vmatpush1.msra.mxu0 0.0
        %1768 = vmatprep.subr.mxu0 0.0
        %1769 = vmatpush1.msra.mxu0 0.0
        %1770 = vmatprep.subr.mxu0 0.0
        %1771 = vmatpush1.msra.mxu0 0.0
        %1772 = vmatprep.subr.mxu0 0.0
        %1773 = vmatpush1.msra.mxu0 0.0
        %1774 = vmatprep.subr.mxu0 0.0
        %1775 = vmatpush1.msra.mxu0 0.0
        %1776 = vmatprep.subr.mxu0 0.0
        %1777 = vmatpush1.msra.mxu0 0.0
        %1778 = vmatprep.subr.mxu0 0.0
        %1779 = vmatpush1.msra.mxu0 0.0
        %1780 = vmatprep.subr.mxu0 0.0
        %1781 = vmatpush1.msra.mxu0 0.0
        %1782 = vmatprep.subr.mxu0 0.0
        %1783 = vmatpush1.msra.mxu0 0.0
        %1784 = vmatprep.subr.mxu0 0.0
        %1785 = vmatpush1.msra.mxu0 0.0
        %1786 = vmatprep.subr.mxu0 0.0
        %1787 = vmatpush1.msra.mxu0 0.0
        %1788 = vmatprep.subr.mxu0 0.0
        %1789 = vmatpush1.msra.mxu0 0.0
        %1790 = vmatprep.subr.mxu0 0.0
        %1791 = vmatpush1.msra.mxu0 0.0
        %1792 = vmatprep.subr.mxu0 0.0
        %1793 = vmatpush1.msra.mxu0 0.0
        %1794 = vmatprep.subr.mxu0 0.0
        %1795 = vmatpush1.msra.mxu0 0.0
        %1796 = vmatprep.subr.mxu0 0.0
        %1797 = vmatpush1.msra.mxu0 0.0
        %1798 = vmatprep.subr.mxu0 0.0
        %1799 = vmatpush1.msra.mxu0 0.0
        %1800 = vmatprep.subr.mxu0 0.0
        %1801 = vmatpush1.msra.mxu0 0.0
        %1802 = vmatprep.subr.mxu0 0.0
        %1803 = vmatpush1.msra.mxu0 0.0
        %1804 = vmatprep.subr.mxu0 0.0
        %1805 = vmatpush1.msra.mxu0 0.0
        %1806 = vmatprep.subr.mxu0 0.0
        %1807 = vmatpush1.msra.mxu0 0.0
        %1808 = vmatprep.mubr.f32.mxu0 0.0
        %v1809 = vand.u32 %v1381, 4294901760
        %1810 = vmatmul.mubr.f32.gmra.mrb[0].mxu0 %v1809
        %v1811 = vpop.f32.mrb[0].mxu0
        %v1812 = vadd.f32 %v1724, %v1811
        %v1813 = vpop.f32.mrb[0].mxu0
        %1814 = vmatprep.mubr.f32.mxu0 0.0
        %v1815 = vand.u32 %v1384, 4294901760
        %1816 = vmatmul.mubr.f32.gmra.mrb[0].mxu0 %v1815
        %v1817 = vpop.f32.mrb[0].mxu0
        %v1818 = vadd.f32 %v1732, %v1817
        %v1819 = vpop.f32.mrb[0].mxu0
        %1820 = vdwg.mxu0
        %1821 = vmatprep.subr.mxu0 0.0
        %v1822 = vand.u32 %v330, 4294901760
        %1823 = vmatpush1.msra.mxu0 %v1822
        %1824 = vmatprep.subr.mxu0 0.0
        %v1825 = vand.u32 %v331, 4294901760
        %1826 = vmatpush1.msra.mxu0 %v1825
        %1827 = vmatprep.subr.mxu0 0.0
        %v1828 = vand.u32 %v342, 4294901760
        %1829 = vmatpush1.msra.mxu0 %v1828
        %1830 = vmatprep.subr.mxu0 0.0
        %1831 = vmatpush1.msra.mxu0 0.0
        %1832 = vmatprep.subr.mxu0 0.0
        %1833 = vmatpush1.msra.mxu0 0.0
        %1834 = vmatprep.subr.mxu0 0.0
        %1835 = vmatpush1.msra.mxu0 0.0
        %1836 = vmatprep.subr.mxu0 0.0
        %1837 = vmatpush1.msra.mxu0 0.0
        %1838 = vmatprep.subr.mxu0 0.0
        %1839 = vmatpush1.msra.mxu0 0.0
        %1840 = vmatprep.subr.mxu0 0.0
        %1841 = vmatpush1.msra.mxu0 0.0
        %1842 = vmatprep.subr.mxu0 0.0
        %1843 = vmatpush1.msra.mxu0 0.0
        %1844 = vmatprep.subr.mxu0 0.0
        %1845 = vmatpush1.msra.mxu0 0.0
        %1846 = vmatprep.subr.mxu0 0.0
        %1847 = vmatpush1.msra.mxu0 0.0
        %1848 = vmatprep.subr.mxu0 0.0
        %1849 = vmatpush1.msra.mxu0 0.0
        %1850 = vmatprep.subr.mxu0 0.0
        %1851 = vmatpush1.msra.mxu0 0.0
        %1852 = vmatprep.subr.mxu0 0.0
        %1853 = vmatpush1.msra.mxu0 0.0
        %1854 = vmatprep.subr.mxu0 0.0
        %1855 = vmatpush1.msra.mxu0 0.0
        %1856 = vmatprep.subr.mxu0 0.0
        %1857 = vmatpush1.msra.mxu0 0.0
        %1858 = vmatprep.subr.mxu0 0.0
        %1859 = vmatpush1.msra.mxu0 0.0
        %1860 = vmatprep.subr.mxu0 0.0
        %1861 = vmatpush1.msra.mxu0 0.0
        %1862 = vmatprep.subr.mxu0 0.0
        %1863 = vmatpush1.msra.mxu0 0.0
        %1864 = vmatprep.subr.mxu0 0.0
        %1865 = vmatpush1.msra.mxu0 0.0
        %1866 = vmatprep.subr.mxu0 0.0
        %1867 = vmatpush1.msra.mxu0 0.0
        %1868 = vmatprep.subr.mxu0 0.0
        %1869 = vmatpush1.msra.mxu0 0.0
        %1870 = vmatprep.subr.mxu0 0.0
        %1871 = vmatpush1.msra.mxu0 0.0
        %1872 = vmatprep.subr.mxu0 0.0
        %1873 = vmatpush1.msra.mxu0 0.0
        %1874 = vmatprep.subr.mxu0 0.0
        %1875 = vmatpush1.msra.mxu0 0.0
        %1876 = vmatprep.subr.mxu0 0.0
        %1877 = vmatpush1.msra.mxu0 0.0
        %1878 = vmatprep.subr.mxu0 0.0
        %1879 = vmatpush1.msra.mxu0 0.0
        %1880 = vmatprep.subr.mxu0 0.0
        %1881 = vmatpush1.msra.mxu0 0.0
        %1882 = vmatprep.subr.mxu0 0.0
        %1883 = vmatpush1.msra.mxu0 0.0
        %1884 = vmatprep.subr.mxu0 0.0
        %1885 = vmatpush1.msra.mxu0 0.0
        %1886 = vmatprep.subr.mxu0 0.0
        %1887 = vmatpush1.msra.mxu0 0.0
        %1888 = vmatprep.mubr.f32.mxu0 0.0
        %v1889 = vand.u32 %v1381, 4294901760
        %1890 = vmatmul.mubr.f32.gmra.mrb[0].mxu0 %v1889
        %v1891 = vpop.f32.mrb[0].mxu0
        %v1892 = vadd.f32 %v1812, %v1891
        %v1893 = vpop.f32.mrb[0].mxu0
        %1894 = vmatprep.mubr.f32.mxu0 0.0
        %v1895 = vand.u32 %v1384, 4294901760
        %1896 = vmatmul.mubr.f32.gmra.mrb[0].mxu0 %v1895
        %v1897 = vpop.f32.mrb[0].mxu0
        %v1898 = vadd.f32 %v1818, %v1897
        %v1899 = vpop.f32.mrb[0].mxu0
        %1900 = vdwg.mxu0
        %v1902 = vsel %vm333, %v315, 0
        %v1905 = vsel %vm333, %v316, 0
        %1907 = vmatprep.subr.mxu0 0.0
        %v1908 = vand.u32 %v330, 4294901760
        %1909 = vmatpush1.msra.mxu0 %v1908
        %1910 = vmatprep.subr.mxu0 0.0
        %v1911 = vand.u32 %v331, 4294901760
        %1912 = vmatpush1.msra.mxu0 %v1911
        %1913 = vmatprep.subr.mxu0 0.0
        %v1914 = vand.u32 %v342, 4294901760
        %1915 = vmatpush1.msra.mxu0 %v1914
        %1916 = vmatprep.subr.mxu0 0.0
        %1917 = vmatpush1.msra.mxu0 0.0
        %1918 = vmatprep.subr.mxu0 0.0
        %1919 = vmatpush1.msra.mxu0 0.0
        %1920 = vmatprep.subr.mxu0 0.0
        %1921 = vmatpush1.msra.mxu0 0.0
        %1922 = vmatprep.subr.mxu0 0.0
        %1923 = vmatpush1.msra.mxu0 0.0
        %1924 = vmatprep.subr.mxu0 0.0
        %1925 = vmatpush1.msra.mxu0 0.0
        %1926 = vmatprep.subr.mxu0 0.0
        %1927 = vmatpush1.msra.mxu0 0.0
        %1928 = vmatprep.subr.mxu0 0.0
        %1929 = vmatpush1.msra.mxu0 0.0
        %1930 = vmatprep.subr.mxu0 0.0
        %1931 = vmatpush1.msra.mxu0 0.0
        %1932 = vmatprep.subr.mxu0 0.0
        %1933 = vmatpush1.msra.mxu0 0.0
        %1934 = vmatprep.subr.mxu0 0.0
        %1935 = vmatpush1.msra.mxu0 0.0
        %1936 = vmatprep.subr.mxu0 0.0
        %1937 = vmatpush1.msra.mxu0 0.0
        %1938 = vmatprep.subr.mxu0 0.0
        %1939 = vmatpush1.msra.mxu0 0.0
        %1940 = vmatprep.subr.mxu0 0.0
        %1941 = vmatpush1.msra.mxu0 0.0
        %1942 = vmatprep.subr.mxu0 0.0
        %1943 = vmatpush1.msra.mxu0 0.0
        %1944 = vmatprep.subr.mxu0 0.0
        %1945 = vmatpush1.msra.mxu0 0.0
        %1946 = vmatprep.subr.mxu0 0.0
        %1947 = vmatpush1.msra.mxu0 0.0
        %1948 = vmatprep.subr.mxu0 0.0
        %1949 = vmatpush1.msra.mxu0 0.0
        %1950 = vmatprep.subr.mxu0 0.0
        %1951 = vmatpush1.msra.mxu0 0.0
        %1952 = vmatprep.subr.mxu0 0.0
        %1953 = vmatpush1.msra.mxu0 0.0
        %1954 = vmatprep.subr.mxu0 0.0
        %1955 = vmatpush1.msra.mxu0 0.0
        %1956 = vmatprep.subr.mxu0 0.0
        %1957 = vmatpush1.msra.mxu0 0.0
        %1958 = vmatprep.subr.mxu0 0.0
        %1959 = vmatpush1.msra.mxu0 0.0
        %1960 = vmatprep.subr.mxu0 0.0
        %1961 = vmatpush1.msra.mxu0 0.0
        %1962 = vmatprep.subr.mxu0 0.0
        %1963 = vmatpush1.msra.mxu0 0.0
        %1964 = vmatprep.subr.mxu0 0.0
        %1965 = vmatpush1.msra.mxu0 0.0
        %1966 = vmatprep.subr.mxu0 0.0
        %1967 = vmatpush1.msra.mxu0 0.0
        %1968 = vmatprep.subr.mxu0 0.0
        %1969 = vmatpush1.msra.mxu0 0.0
        %1970 = vmatprep.subr.mxu0 0.0
        %1971 = vmatpush1.msra.mxu0 0.0
        %1972 = vmatprep.subr.mxu0 0.0
        %1973 = vmatpush1.msra.mxu0 0.0
        %1974 = vmatprep.mubr.f32.mxu0 0.0
        %v1975 = vand.u32 %v1902, 4294901760
        %v1976 = vsub.f32 %v1902, %v1975
        %v1977 = vand.u32 %v1976, 4294901760
        %v1978 = vsub.f32 %v1976, %v1977
        %v1979 = vand.u32 %v1978, 4294901760
        %1980 = vmatmul.mubr.f32.gmra.mrb[0].mxu0 %v1979
        %v1981 = vpop.f32.mrb[0].mxu0
        %v1982 = vadd.f32 0.0, %v1981
        %v1983 = vpop.f32.mrb[0].mxu0
        %1984 = vmatprep.mubr.f32.mxu0 0.0
        %v1985 = vand.u32 %v1905, 4294901760
        %v1986 = vsub.f32 %v1905, %v1985
        %v1987 = vand.u32 %v1986, 4294901760
        %v1988 = vsub.f32 %v1986, %v1987
        %v1989 = vand.u32 %v1988, 4294901760
        %1990 = vmatmul.mubr.f32.gmra.mrb[0].mxu0 %v1989
        %v1991 = vpop.f32.mrb[0].mxu0
        %v1992 = vadd.f32 0.0, %v1991
        %v1993 = vpop.f32.mrb[0].mxu0
        %1994 = vdwg.mxu0
        %1995 = vmatprep.subr.mxu0 0.0
        %v1996 = vand.u32 %v330, 4294901760
        %v1997 = vsub.f32 %v330, %v1996
        %v1998 = vand.u32 %v1997, 4294901760
        %v1999 = vsub.f32 %v1997, %v1998
        %v2000 = vand.u32 %v1999, 4294901760
        %2001 = vmatpush1.msra.mxu0 %v2000
        %2002 = vmatprep.subr.mxu0 0.0
        %v2003 = vand.u32 %v331, 4294901760
        %v2004 = vsub.f32 %v331, %v2003
        %v2005 = vand.u32 %v2004, 4294901760
        %v2006 = vsub.f32 %v2004, %v2005
        %v2007 = vand.u32 %v2006, 4294901760
        %2008 = vmatpush1.msra.mxu0 %v2007
        %2009 = vmatprep.subr.mxu0 0.0
        %v2010 = vand.u32 %v342, 4294901760
        %v2011 = vsub.f32 %v342, %v2010
        %v2012 = vand.u32 %v2011, 4294901760
        %v2013 = vsub.f32 %v2011, %v2012
        %v2014 = vand.u32 %v2013, 4294901760
        %2015 = vmatpush1.msra.mxu0 %v2014
        %2016 = vmatprep.subr.mxu0 0.0
        %2017 = vmatpush1.msra.mxu0 0.0
        %2018 = vmatprep.subr.mxu0 0.0
        %2019 = vmatpush1.msra.mxu0 0.0
        %2020 = vmatprep.subr.mxu0 0.0
        %2021 = vmatpush1.msra.mxu0 0.0
        %2022 = vmatprep.subr.mxu0 0.0
        %2023 = vmatpush1.msra.mxu0 0.0
        %2024 = vmatprep.subr.mxu0 0.0
        %2025 = vmatpush1.msra.mxu0 0.0
        %2026 = vmatprep.subr.mxu0 0.0
        %2027 = vmatpush1.msra.mxu0 0.0
        %2028 = vmatprep.subr.mxu0 0.0
        %2029 = vmatpush1.msra.mxu0 0.0
        %2030 = vmatprep.subr.mxu0 0.0
        %2031 = vmatpush1.msra.mxu0 0.0
        %2032 = vmatprep.subr.mxu0 0.0
        %2033 = vmatpush1.msra.mxu0 0.0
        %2034 = vmatprep.subr.mxu0 0.0
        %2035 = vmatpush1.msra.mxu0 0.0
        %2036 = vmatprep.subr.mxu0 0.0
        %2037 = vmatpush1.msra.mxu0 0.0
        %2038 = vmatprep.subr.mxu0 0.0
        %2039 = vmatpush1.msra.mxu0 0.0
        %2040 = vmatprep.subr.mxu0 0.0
        %2041 = vmatpush1.msra.mxu0 0.0
        %2042 = vmatprep.subr.mxu0 0.0
        %2043 = vmatpush1.msra.mxu0 0.0
        %2044 = vmatprep.subr.mxu0 0.0
        %2045 = vmatpush1.msra.mxu0 0.0
        %2046 = vmatprep.subr.mxu0 0.0
        %2047 = vmatpush1.msra.mxu0 0.0
        %2048 = vmatprep.subr.mxu0 0.0
        %2049 = vmatpush1.msra.mxu0 0.0
        %2050 = vmatprep.subr.mxu0 0.0
        %2051 = vmatpush1.msra.mxu0 0.0
        %2052 = vmatprep.subr.mxu0 0.0
        %2053 = vmatpush1.msra.mxu0 0.0
        %2054 = vmatprep.subr.mxu0 0.0
        %2055 = vmatpush1.msra.mxu0 0.0
        %2056 = vmatprep.subr.mxu0 0.0
        %2057 = vmatpush1.msra.mxu0 0.0
        %2058 = vmatprep.subr.mxu0 0.0
        %2059 = vmatpush1.msra.mxu0 0.0
        %2060 = vmatprep.subr.mxu0 0.0
        %2061 = vmatpush1.msra.mxu0 0.0
        %2062 = vmatprep.subr.mxu0 0.0
        %2063 = vmatpush1.msra.mxu0 0.0
        %2064 = vmatprep.subr.mxu0 0.0
        %2065 = vmatpush1.msra.mxu0 0.0
        %2066 = vmatprep.subr.mxu0 0.0
        %2067 = vmatpush1.msra.mxu0 0.0
        %2068 = vmatprep.subr.mxu0 0.0
        %2069 = vmatpush1.msra.mxu0 0.0
        %2070 = vmatprep.subr.mxu0 0.0
        %2071 = vmatpush1.msra.mxu0 0.0
        %2072 = vmatprep.subr.mxu0 0.0
        %2073 = vmatpush1.msra.mxu0 0.0
        %2074 = vmatprep.mubr.f32.mxu0 0.0
        %v2075 = vand.u32 %v1902, 4294901760
        %2076 = vmatmul.mubr.f32.gmra.mrb[0].mxu0 %v2075
        %v2077 = vpop.f32.mrb[0].mxu0
        %v2078 = vadd.f32 %v1982, %v2077
        %v2079 = vpop.f32.mrb[0].mxu0
        %2080 = vmatprep.mubr.f32.mxu0 0.0
        %v2081 = vand.u32 %v1905, 4294901760
        %2082 = vmatmul.mubr.f32.gmra.mrb[0].mxu0 %v2081
        %v2083 = vpop.f32.mrb[0].mxu0
        %v2084 = vadd.f32 %v1992, %v2083
        %v2085 = vpop.f32.mrb[0].mxu0
        %2086 = vdwg.mxu0
        %2087 = vmatprep.subr.mxu0 0.0
        %v2088 = vand.u32 %v330, 4294901760
        %v2089 = vsub.f32 %v330, %v2088
        %2090 = vmatpush1.msra.mxu0 %v2089
        %2091 = vmatprep.subr.mxu0 0.0
        %v2092 = vand.u32 %v331, 4294901760
        %v2093 = vsub.f32 %v331, %v2092
        %2094 = vmatpush1.msra.mxu0 %v2093
        %2095 = vmatprep.subr.mxu0 0.0
        %v2096 = vand.u32 %v342, 4294901760
        %v2097 = vsub.f32 %v342, %v2096
        %2098 = vmatpush1.msra.mxu0 %v2097
        %2099 = vmatprep.subr.mxu0 0.0
        %2100 = vmatpush1.msra.mxu0 0.0
        %2101 = vmatprep.subr.mxu0 0.0
        %2102 = vmatpush1.msra.mxu0 0.0
        %2103 = vmatprep.subr.mxu0 0.0
        %2104 = vmatpush1.msra.mxu0 0.0
        %2105 = vmatprep.subr.mxu0 0.0
        %2106 = vmatpush1.msra.mxu0 0.0
        %2107 = vmatprep.subr.mxu0 0.0
        %2108 = vmatpush1.msra.mxu0 0.0
        %2109 = vmatprep.subr.mxu0 0.0
        %2110 = vmatpush1.msra.mxu0 0.0
        %2111 = vmatprep.subr.mxu0 0.0
        %2112 = vmatpush1.msra.mxu0 0.0
        %2113 = vmatprep.subr.mxu0 0.0
        %2114 = vmatpush1.msra.mxu0 0.0
        %2115 = vmatprep.subr.mxu0 0.0
        %2116 = vmatpush1.msra.mxu0 0.0
        %2117 = vmatprep.subr.mxu0 0.0
        %2118 = vmatpush1.msra.mxu0 0.0
        %2119 = vmatprep.subr.mxu0 0.0
        %2120 = vmatpush1.msra.mxu0 0.0
        %2121 = vmatprep.subr.mxu0 0.0
        %2122 = vmatpush1.msra.mxu0 0.0
        %2123 = vmatprep.subr.mxu0 0.0
        %2124 = vmatpush1.msra.mxu0 0.0
        %2125 = vmatprep.subr.mxu0 0.0
        %2126 = vmatpush1.msra.mxu0 0.0
        %2127 = vmatprep.subr.mxu0 0.0
        %2128 = vmatpush1.msra.mxu0 0.0
        %2129 = vmatprep.subr.mxu0 0.0
        %2130 = vmatpush1.msra.mxu0 0.0
        %2131 = vmatprep.subr.mxu0 0.0
        %2132 = vmatpush1.msra.mxu0 0.0
        %2133 = vmatprep.subr.mxu0 0.0
        %2134 = vmatpush1.msra.mxu0 0.0
        %2135 = vmatprep.subr.mxu0 0.0
        %2136 = vmatpush1.msra.mxu0 0.0
        %2137 = vmatprep.subr.mxu0 0.0
        %2138 = vmatpush1.msra.mxu0 0.0
        %2139 = vmatprep.subr.mxu0 0.0
        %2140 = vmatpush1.msra.mxu0 0.0
        %2141 = vmatprep.subr.mxu0 0.0
        %2142 = vmatpush1.msra.mxu0 0.0
        %2143 = vmatprep.subr.mxu0 0.0
        %2144 = vmatpush1.msra.mxu0 0.0
        %2145 = vmatprep.subr.mxu0 0.0
        %2146 = vmatpush1.msra.mxu0 0.0
        %2147 = vmatprep.subr.mxu0 0.0
        %2148 = vmatpush1.msra.mxu0 0.0
        %2149 = vmatprep.subr.mxu0 0.0
        %2150 = vmatpush1.msra.mxu0 0.0
        %2151 = vmatprep.subr.mxu0 0.0
        %2152 = vmatpush1.msra.mxu0 0.0
        %2153 = vmatprep.subr.mxu0 0.0
        %2154 = vmatpush1.msra.mxu0 0.0
        %2155 = vmatprep.subr.mxu0 0.0
        %2156 = vmatpush1.msra.mxu0 0.0
        %2157 = vmatprep.mubr.f32.mxu0 0.0
        %v2158 = vand.u32 %v1902, 4294901760
        %v2159 = vsub.f32 %v1902, %v2158
        %2160 = vmatmul.mubr.f32.gmra.mrb[0].mxu0 %v2159
        %v2161 = vpop.f32.mrb[0].mxu0
        %v2162 = vadd.f32 %v2078, %v2161
        %v2163 = vpop.f32.mrb[0].mxu0
        %2164 = vmatprep.mubr.f32.mxu0 0.0
        %v2165 = vand.u32 %v1905, 4294901760
        %v2166 = vsub.f32 %v1905, %v2165
        %2167 = vmatmul.mubr.f32.gmra.mrb[0].mxu0 %v2166
        %v2168 = vpop.f32.mrb[0].mxu0
        %v2169 = vadd.f32 %v2084, %v2168
        %v2170 = vpop.f32.mrb[0].mxu0
        %2171 = vdwg.mxu0
        %2172 = vmatprep.subr.mxu0 0.0
        %v2173 = vand.u32 %v330, 4294901760
        %2174 = vmatpush1.msra.mxu0 %v2173
        %2175 = vmatprep.subr.mxu0 0.0
        %v2176 = vand.u32 %v331, 4294901760
        %2177 = vmatpush1.msra.mxu0 %v2176
        %2178 = vmatprep.subr.mxu0 0.0
        %v2179 = vand.u32 %v342, 4294901760
        %2180 = vmatpush1.msra.mxu0 %v2179
        %2181 = vmatprep.subr.mxu0 0.0
        %2182 = vmatpush1.msra.mxu0 0.0
        %2183 = vmatprep.subr.mxu0 0.0
        %2184 = vmatpush1.msra.mxu0 0.0
        %2185 = vmatprep.subr.mxu0 0.0
        %2186 = vmatpush1.msra.mxu0 0.0
        %2187 = vmatprep.subr.mxu0 0.0
        %2188 = vmatpush1.msra.mxu0 0.0
        %2189 = vmatprep.subr.mxu0 0.0
        %2190 = vmatpush1.msra.mxu0 0.0
        %2191 = vmatprep.subr.mxu0 0.0
        %2192 = vmatpush1.msra.mxu0 0.0
        %2193 = vmatprep.subr.mxu0 0.0
        %2194 = vmatpush1.msra.mxu0 0.0
        %2195 = vmatprep.subr.mxu0 0.0
        %2196 = vmatpush1.msra.mxu0 0.0
        %2197 = vmatprep.subr.mxu0 0.0
        %2198 = vmatpush1.msra.mxu0 0.0
        %2199 = vmatprep.subr.mxu0 0.0
        %2200 = vmatpush1.msra.mxu0 0.0
        %2201 = vmatprep.subr.mxu0 0.0
        %2202 = vmatpush1.msra.mxu0 0.0
        %2203 = vmatprep.subr.mxu0 0.0
        %2204 = vmatpush1.msra.mxu0 0.0
        %2205 = vmatprep.subr.mxu0 0.0
        %2206 = vmatpush1.msra.mxu0 0.0
        %2207 = vmatprep.subr.mxu0 0.0
        %2208 = vmatpush1.msra.mxu0 0.0
        %2209 = vmatprep.subr.mxu0 0.0
        %2210 = vmatpush1.msra.mxu0 0.0
        %2211 = vmatprep.subr.mxu0 0.0
        %2212 = vmatpush1.msra.mxu0 0.0
        %2213 = vmatprep.subr.mxu0 0.0
        %2214 = vmatpush1.msra.mxu0 0.0
        %2215 = vmatprep.subr.mxu0 0.0
        %2216 = vmatpush1.msra.mxu0 0.0
        %2217 = vmatprep.subr.mxu0 0.0
        %2218 = vmatpush1.msra.mxu0 0.0
        %2219 = vmatprep.subr.mxu0 0.0
        %2220 = vmatpush1.msra.mxu0 0.0
        %2221 = vmatprep.subr.mxu0 0.0
        %2222 = vmatpush1.msra.mxu0 0.0
        %2223 = vmatprep.subr.mxu0 0.0
        %2224 = vmatpush1.msra.mxu0 0.0
        %2225 = vmatprep.subr.mxu0 0.0
        %2226 = vmatpush1.msra.mxu0 0.0
        %2227 = vmatprep.subr.mxu0 0.0
        %2228 = vmatpush1.msra.mxu0 0.0
        %2229 = vmatprep.subr.mxu0 0.0
        %2230 = vmatpush1.msra.mxu0 0.0
        %2231 = vmatprep.subr.mxu0 0.0
        %2232 = vmatpush1.msra.mxu0 0.0
        %2233 = vmatprep.subr.mxu0 0.0
        %2234 = vmatpush1.msra.mxu0 0.0
        %2235 = vmatprep.subr.mxu0 0.0
        %2236 = vmatpush1.msra.mxu0 0.0
        %2237 = vmatprep.subr.mxu0 0.0
        %2238 = vmatpush1.msra.mxu0 0.0
        %2239 = vmatprep.mubr.f32.mxu0 0.0
        %v2240 = vand.u32 %v1902, 4294901760
        %v2241 = vsub.f32 %v1902, %v2240
        %v2242 = vand.u32 %v2241, 4294901760
        %2243 = vmatmul.mubr.f32.gmra.mrb[0].mxu0 %v2242
        %v2244 = vpop.f32.mrb[0].mxu0
        %v2245 = vadd.f32 %v2162, %v2244
        %v2246 = vpop.f32.mrb[0].mxu0
        %2247 = vmatprep.mubr.f32.mxu0 0.0
        %v2248 = vand.u32 %v1905, 4294901760
        %v2249 = vsub.f32 %v1905, %v2248
        %v2250 = vand.u32 %v2249, 4294901760
        %2251 = vmatmul.mubr.f32.gmra.mrb[0].mxu0 %v2250
        %v2252 = vpop.f32.mrb[0].mxu0
        %v2253 = vadd.f32 %v2169, %v2252
        %v2254 = vpop.f32.mrb[0].mxu0
        %2255 = vdwg.mxu0
        %2256 = vmatprep.subr.mxu0 0.0
        %v2257 = vand.u32 %v330, 4294901760
        %v2258 = vsub.f32 %v330, %v2257
        %v2259 = vand.u32 %v2258, 4294901760
        %2260 = vmatpush1.msra.mxu0 %v2259
        %2261 = vmatprep.subr.mxu0 0.0
        %v2262 = vand.u32 %v331, 4294901760
        %v2263 = vsub.f32 %v331, %v2262
        %v2264 = vand.u32 %v2263, 4294901760
        %2265 = vmatpush1.msra.mxu0 %v2264
        %2266 = vmatprep.subr.mxu0 0.0
        %v2267 = vand.u32 %v342, 4294901760
        %v2268 = vsub.f32 %v342, %v2267
        %v2269 = vand.u32 %v2268, 4294901760
        %2270 = vmatpush1.msra.mxu0 %v2269
        %2271 = vmatprep.subr.mxu0 0.0
        %2272 = vmatpush1.msra.mxu0 0.0
        %2273 = vmatprep.subr.mxu0 0.0
        %2274 = vmatpush1.msra.mxu0 0.0
        %2275 = vmatprep.subr.mxu0 0.0
        %2276 = vmatpush1.msra.mxu0 0.0
        %2277 = vmatprep.subr.mxu0 0.0
        %2278 = vmatpush1.msra.mxu0 0.0
        %2279 = vmatprep.subr.mxu0 0.0
        %2280 = vmatpush1.msra.mxu0 0.0
        %2281 = vmatprep.subr.mxu0 0.0
        %2282 = vmatpush1.msra.mxu0 0.0
        %2283 = vmatprep.subr.mxu0 0.0
        %2284 = vmatpush1.msra.mxu0 0.0
        %2285 = vmatprep.subr.mxu0 0.0
        %2286 = vmatpush1.msra.mxu0 0.0
        %2287 = vmatprep.subr.mxu0 0.0
        %2288 = vmatpush1.msra.mxu0 0.0
        %2289 = vmatprep.subr.mxu0 0.0
        %2290 = vmatpush1.msra.mxu0 0.0
        %2291 = vmatprep.subr.mxu0 0.0
        %2292 = vmatpush1.msra.mxu0 0.0
        %2293 = vmatprep.subr.mxu0 0.0
        %2294 = vmatpush1.msra.mxu0 0.0
        %2295 = vmatprep.subr.mxu0 0.0
        %2296 = vmatpush1.msra.mxu0 0.0
        %2297 = vmatprep.subr.mxu0 0.0
        %2298 = vmatpush1.msra.mxu0 0.0
        %2299 = vmatprep.subr.mxu0 0.0
        %2300 = vmatpush1.msra.mxu0 0.0
        %2301 = vmatprep.subr.mxu0 0.0
        %2302 = vmatpush1.msra.mxu0 0.0
        %2303 = vmatprep.subr.mxu0 0.0
        %2304 = vmatpush1.msra.mxu0 0.0
        %2305 = vmatprep.subr.mxu0 0.0
        %2306 = vmatpush1.msra.mxu0 0.0
        %2307 = vmatprep.subr.mxu0 0.0
        %2308 = vmatpush1.msra.mxu0 0.0
        %2309 = vmatprep.subr.mxu0 0.0
        %2310 = vmatpush1.msra.mxu0 0.0
        %2311 = vmatprep.subr.mxu0 0.0
        %2312 = vmatpush1.msra.mxu0 0.0
        %2313 = vmatprep.subr.mxu0 0.0
        %2314 = vmatpush1.msra.mxu0 0.0
        %2315 = vmatprep.subr.mxu0 0.0
        %2316 = vmatpush1.msra.mxu0 0.0
        %2317 = vmatprep.subr.mxu0 0.0
        %2318 = vmatpush1.msra.mxu0 0.0
        %2319 = vmatprep.subr.mxu0 0.0
        %2320 = vmatpush1.msra.mxu0 0.0
        %2321 = vmatprep.subr.mxu0 0.0
        %2322 = vmatpush1.msra.mxu0 0.0
        %2323 = vmatprep.subr.mxu0 0.0
        %2324 = vmatpush1.msra.mxu0 0.0
        %2325 = vmatprep.subr.mxu0 0.0
        %2326 = vmatpush1.msra.mxu0 0.0
        %2327 = vmatprep.subr.mxu0 0.0
        %2328 = vmatpush1.msra.mxu0 0.0
        %2329 = vmatprep.mubr.f32.mxu0 0.0
        %v2330 = vand.u32 %v1902, 4294901760
        %2331 = vmatmul.mubr.f32.gmra.mrb[0].mxu0 %v2330
        %v2332 = vpop.f32.mrb[0].mxu0
        %v2333 = vadd.f32 %v2245, %v2332
        %v2334 = vpop.f32.mrb[0].mxu0
        %2335 = vmatprep.mubr.f32.mxu0 0.0
        %v2336 = vand.u32 %v1905, 4294901760
        %2337 = vmatmul.mubr.f32.gmra.mrb[0].mxu0 %v2336
        %v2338 = vpop.f32.mrb[0].mxu0
        %v2339 = vadd.f32 %v2253, %v2338
        %v2340 = vpop.f32.mrb[0].mxu0
        %2341 = vdwg.mxu0
        %2342 = vmatprep.subr.mxu0 0.0
        %v2343 = vand.u32 %v330, 4294901760
        %2344 = vmatpush1.msra.mxu0 %v2343
        %2345 = vmatprep.subr.mxu0 0.0
        %v2346 = vand.u32 %v331, 4294901760
        %2347 = vmatpush1.msra.mxu0 %v2346
        %2348 = vmatprep.subr.mxu0 0.0
        %v2349 = vand.u32 %v342, 4294901760
        %2350 = vmatpush1.msra.mxu0 %v2349
        %2351 = vmatprep.subr.mxu0 0.0
        %2352 = vmatpush1.msra.mxu0 0.0
        %2353 = vmatprep.subr.mxu0 0.0
        %2354 = vmatpush1.msra.mxu0 0.0
        %2355 = vmatprep.subr.mxu0 0.0
        %2356 = vmatpush1.msra.mxu0 0.0
        %2357 = vmatprep.subr.mxu0 0.0
        %2358 = vmatpush1.msra.mxu0 0.0
        %2359 = vmatprep.subr.mxu0 0.0
        %2360 = vmatpush1.msra.mxu0 0.0
        %2361 = vmatprep.subr.mxu0 0.0
        %2362 = vmatpush1.msra.mxu0 0.0
        %2363 = vmatprep.subr.mxu0 0.0
        %2364 = vmatpush1.msra.mxu0 0.0
        %2365 = vmatprep.subr.mxu0 0.0
        %2366 = vmatpush1.msra.mxu0 0.0
        %2367 = vmatprep.subr.mxu0 0.0
        %2368 = vmatpush1.msra.mxu0 0.0
        %2369 = vmatprep.subr.mxu0 0.0
        %2370 = vmatpush1.msra.mxu0 0.0
        %2371 = vmatprep.subr.mxu0 0.0
        %2372 = vmatpush1.msra.mxu0 0.0
        %2373 = vmatprep.subr.mxu0 0.0
        %2374 = vmatpush1.msra.mxu0 0.0
        %2375 = vmatprep.subr.mxu0 0.0
        %2376 = vmatpush1.msra.mxu0 0.0
        %2377 = vmatprep.subr.mxu0 0.0
        %2378 = vmatpush1.msra.mxu0 0.0
        %2379 = vmatprep.subr.mxu0 0.0
        %2380 = vmatpush1.msra.mxu0 0.0
        %2381 = vmatprep.subr.mxu0 0.0
        %2382 = vmatpush1.msra.mxu0 0.0
        %2383 = vmatprep.subr.mxu0 0.0
        %2384 = vmatpush1.msra.mxu0 0.0
        %2385 = vmatprep.subr.mxu0 0.0
        %2386 = vmatpush1.msra.mxu0 0.0
        %2387 = vmatprep.subr.mxu0 0.0
        %2388 = vmatpush1.msra.mxu0 0.0
        %2389 = vmatprep.subr.mxu0 0.0
        %2390 = vmatpush1.msra.mxu0 0.0
        %2391 = vmatprep.subr.mxu0 0.0
        %2392 = vmatpush1.msra.mxu0 0.0
        %2393 = vmatprep.subr.mxu0 0.0
        %2394 = vmatpush1.msra.mxu0 0.0
        %2395 = vmatprep.subr.mxu0 0.0
        %2396 = vmatpush1.msra.mxu0 0.0
        %2397 = vmatprep.subr.mxu0 0.0
        %2398 = vmatpush1.msra.mxu0 0.0
        %2399 = vmatprep.subr.mxu0 0.0
        %2400 = vmatpush1.msra.mxu0 0.0
        %2401 = vmatprep.subr.mxu0 0.0
        %2402 = vmatpush1.msra.mxu0 0.0
        %2403 = vmatprep.subr.mxu0 0.0
        %2404 = vmatpush1.msra.mxu0 0.0
        %2405 = vmatprep.subr.mxu0 0.0
        %2406 = vmatpush1.msra.mxu0 0.0
        %2407 = vmatprep.subr.mxu0 0.0
        %2408 = vmatpush1.msra.mxu0 0.0
        %2409 = vmatprep.mubr.f32.mxu0 0.0
        %v2410 = vand.u32 %v1902, 4294901760
        %2411 = vmatmul.mubr.f32.gmra.mrb[0].mxu0 %v2410
        %v2412 = vpop.f32.mrb[0].mxu0
        %v2413 = vadd.f32 %v2333, %v2412
        %v2414 = vpop.f32.mrb[0].mxu0
        %2415 = vmatprep.mubr.f32.mxu0 0.0
        %v2416 = vand.u32 %v1905, 4294901760
        %2417 = vmatmul.mubr.f32.gmra.mrb[0].mxu0 %v2416
        %v2418 = vpop.f32.mrb[0].mxu0
        %v2419 = vadd.f32 %v2339, %v2418
        %v2420 = vpop.f32.mrb[0].mxu0
        %2421 = vdwg.mxu0
        %vm2422 = vcmask 72704
        %2423 = vst.msk [vmem:[%s140] sm:$0xff] %vm2422, %v850
        %vm2424 = vcmask 65536
        %2425 = vst.msk [vmem:[%s140 + $0x8] sm:$0x1] %vm2424, %v856
        %2426 = vst.msk [vmem:[%s140 + $0x10] sm:$0xff] %vm2422, %v1371
        %2427 = vst.msk [vmem:[%s140 + $0x18] sm:$0x1] %vm2424, %v1377
        %2428 = vst.msk [vmem:[%s140 + $0x20] sm:$0xff] %vm2422, %v1892
        %2429 = vst.msk [vmem:[%s140 + $0x28] sm:$0x1] %vm2424, %v1898
        %2430 = vst.msk [vmem:[%s140 + $0x30] sm:$0xff] %vm2422, %v2413
        %2431 = vst.msk [vmem:[%s140 + $0x38] sm:$0x1] %vm2424, %v2419
        %s2432 = smul.u32 4, %s15
        %p2433 = scmp.lt.s32.totalorder %s2432, 7
        %s2434 = scalar_select %p2433, %s2432, 7
        %s2435 = smul.addr %s2434, 2
        %s2436 = smul.addr %s2435, 8
        %s2437 = scalar_lea.vmem %s1, %s2436
        // Predicated region
        $region29: #{tpu_custom_call.1} parent=23 // pred_check
          %p2438 = pneg %p59
        $region30: #{tpu_custom_call.1} parent=23 // pred_check_branch
          %2440 = sbr.rel (%p2438) target = $region32
        $region31: #{tpu_custom_call.1} parent=23 // pred_region
          %s2441 = smul.u32 4, %s15
        $region32: #{tpu_custom_call.1} parent=23 // pred_fallthru
          _
      $region24: #{tpu_custom_call.1} parent=5 // pred_fallthru
        _
      %p2442 = scmp.le.s32.totalorder 2, %s10
      // Predicated region
      $region33: #{tpu_custom_call.1} parent=5 // pred_check
        %p2443 = pneg %p2442
      $region34: #{tpu_custom_call.1} parent=5 // pred_check_branch
        %2445 = sbr.rel (%p2443) target = $region36
      $region35: #{tpu_custom_call.1} parent=5 // pred_region
        %s2446 = ssub.s32 %s10, 2
        // Predicated region
        $region37: #{tpu_custom_call.1} parent=35 // pred_check
          %p2447 = pneg %p65
        $region38: #{tpu_custom_call.1} parent=35 // pred_check_branch
          %2449 = sbr.rel (%p2447) target = $region40
        $region39: #{tpu_custom_call.1} parent=35 // pred_region
          %s2450 = smul.u32 4, %s16
          %p2451 = scmp.lt.s32.totalorder %s2450, 7
          %s2452 = scalar_select %p2451, %s2450, 7
          %s2453 = smul.addr %s2452, 2
          %s2454 = smul.addr %s2453, 8
          %s2455 = scalar_lea.vmem %s1, %s2454
        $region40: #{tpu_custom_call.1} parent=35 // pred_fallthru
          _
      $region36: #{tpu_custom_call.1} parent=5 // pred_fallthru
        _
    $region6: #{tpu_custom_call.1} parent=1 // loop_footer
      %s14 = sadd.s32 1, %s10
    $region7: #{tpu_custom_call.1} parent=1 // loop_footer_branch
      %9 = sbr.rel target = $region3
    $region8: #{tpu_custom_call.1} parent=1 // loop_exit
      _
    %2456 = vsyncpa [#allocation5], 1
    %s2457 = scalar_lea.sflag [#allocation5], 1
    %2458 = vsyncpa %s2457, 1

</llo_original>
